<compile_context>
chip_gen: v7x
topology: tpu7x:2x2x1
jax: 0.10.0
libtpu: 0.0.40
codegen_flags: <defaults>
</compile_context>

<pallas_src>
import functools

import jax
import jax.numpy as jnp
from jax import lax
from jax.experimental import pallas as pl
from jax.experimental.pallas import tpu as pltpu


# ---------------------------------------------------------------------------
# helpers
# ---------------------------------------------------------------------------
def _round_up(x, m):
    return (x + m - 1) // m * m


def _pick_chunk(T):
    for tc in (32, 16, 8, 4, 2, 1):
        if T % tc == 0:
            return tc
    return 1


# ---------------------------------------------------------------------------
# Pallas kernels
# ---------------------------------------------------------------------------
def _lstm_seq_chunk_kernel(x_ref, wih_ref, whh_ref, b_ref, out_ref, h_sc, c_sc,
                           *, tc):
    """One LSTM layer, Tc time steps per grid iteration, full sequence output.

    x_ref   : (Tc, Bp, I)
    wih_ref : (I, 4Hp)    W_ih^T (gate blocks padded to Hp)
    whh_ref : (Hp, 4Hp)   W_hh^T
    b_ref   : (1, 4Hp)    b_ih + b_hh
    out_ref : (Tc, Bp, Hp)
    h_sc/c_sc : (Bp, Hp)  persistent state across the time grid
    """
    chunk = pl.program_id(0)

    @pl.when(chunk == 0)
    def _():
        h_sc[...] = jnp.zeros_like(h_sc)
        c_sc[...] = jnp.zeros_like(c_sc)

    Bp = h_sc.shape[0]
    Hp = h_sc.shape[1]
    I = x_ref.shape[-1]

    # Hoisted input projection: one big MXU matmul per chunk (M = Tc*Bp rows).
    x_chunk = x_ref[...].reshape(tc * Bp, I)
    gx = jnp.dot(x_chunk, wih_ref[...],
                 preferred_element_type=jnp.float32) + b_ref[...]
    gx = gx.reshape(tc, Bp, 4 * Hp)

    whh = whh_ref[...]
    h = h_sc[...]
    c = c_sc[...]
    for t in range(tc):                       # statically unrolled recurrence
        gates = gx[t] + jnp.dot(h, whh, preferred_element_type=jnp.float32)
        i_g = jax.nn.sigmoid(gates[:, 0:Hp])          # PyTorch gate order i,f,g,o
        f_g = jax.nn.sigmoid(gates[:, Hp:2 * Hp])
        g_g = jnp.tanh(gates[:, 2 * Hp:3 * Hp])
        o_g = jax.nn.sigmoid(gates[:, 3 * Hp:4 * Hp])
        c = f_g * c + i_g * g_g
        h = o_g * jnp.tanh(c)
        out_ref[t] = h.astype(out_ref.dtype)
    h_sc[...] = h
    c_sc[...] = c


def _lstm_last_head_kernel(x_ref, wih_ref, whh_ref, b_ref, wout_ref, bout_ref,
                           out_ref, h_sc, c_sc, *, tc):
    """Last LSTM layer fused with Linear(H->O) + Softmax.

    Only the final hidden state is needed, so the sequence is never written
    to HBM; the head result is produced at the final time chunk.
    out_ref : (Bp, O)
    """
    chunk = pl.program_id(0)

    @pl.when(chunk == 0)
    def _():
        h_sc[...] = jnp.zeros_like(h_sc)
        c_sc[...] = jnp.zeros_like(c_sc)

    Bp = h_sc.shape[0]
    Hp = h_sc.shape[1]
    I = x_ref.shape[-1]

    x_chunk = x_ref[...].reshape(tc * Bp, I)
    gx = jnp.dot(x_chunk, wih_ref[...],
                 preferred_element_type=jnp.float32) + b_ref[...]
    gx = gx.reshape(tc, Bp, 4 * Hp)

    whh = whh_ref[...]
    h = h_sc[...]
    c = c_sc[...]
    for t in range(tc):
        gates = gx[t] + jnp.dot(h, whh, preferred_element_type=jnp.float32)
        i_g = jax.nn.sigmoid(gates[:, 0:Hp])
        f_g = jax.nn.sigmoid(gates[:, Hp:2 * Hp])
        g_g = jnp.tanh(gates[:, 2 * Hp:3 * Hp])
        o_g = jax.nn.sigmoid(gates[:, 3 * Hp:4 * Hp])
        c = f_g * c + i_g * g_g
        h = o_g * jnp.tanh(c)
    h_sc[...] = h
    c_sc[...] = c

    @pl.when(chunk == pl.num_programs(0) - 1)
    def _():
        logits = jnp.dot(h, wout_ref[...],
                         preferred_element_type=jnp.float32) + bout_ref[...]
        m = jnp.max(logits, axis=-1, keepdims=True)
        e = jnp.exp(logits - m)
        out_ref[...] = (e / jnp.sum(e, axis=-1, keepdims=True)).astype(out_ref.dtype)


# ---------------------------------------------------------------------------
# pallas_call wrappers
# ---------------------------------------------------------------------------
def lstm_layer_seq_pallas(x_tm, wih_t, whh_t, b, hp):
    """x_tm: (T, Bp, I) time-major, padded. Returns (T, Bp, Hp)."""
    T, Bp, I = x_tm.shape
    tc = _pick_chunk(T)
    kernel = functools.partial(_lstm_seq_chunk_kernel, tc=tc)
    return pl.pallas_call(
        kernel,
        out_shape=jax.ShapeDtypeStruct((T, Bp, hp), x_tm.dtype),
        grid_spec=pltpu.PrefetchScalarGridSpec(
            num_scalar_prefetch=0,
            grid=(T // tc,),
            in_specs=[
                pl.BlockSpec((tc, Bp, I), lambda c: (c, 0, 0)),
                pl.BlockSpec((I, 4 * hp), lambda c: (0, 0)),
                pl.BlockSpec((hp, 4 * hp), lambda c: (0, 0)),
                pl.BlockSpec((1, 4 * hp), lambda c: (0, 0)),
            ],
            out_specs=pl.BlockSpec((tc, Bp, hp), lambda c: (c, 0, 0)),
            scratch_shapes=[
                pltpu.VMEM((Bp, hp), jnp.float32),
                pltpu.VMEM((Bp, hp), jnp.float32),
            ],
        ),
        compiler_params=pltpu.CompilerParams(
            dimension_semantics=("arbitrary",)),
    )(x_tm, wih_t, whh_t, b)


def lstm_last_layer_head_pallas(x_tm, wih_t, whh_t, b, wout_t, bout, hp):
    """Last layer + head. Returns softmax(h_T @ W_out^T + b_out) : (Bp, O)."""
    T, Bp, I = x_tm.shape
    O = wout_t.shape[1]
    tc = _pick_chunk(T)
    kernel = functools.partial(_lstm_last_head_kernel, tc=tc)
    return pl.pallas_call(
        kernel,
        out_shape=jax.ShapeDtypeStruct((Bp, O), x_tm.dtype),
        grid_spec=pltpu.PrefetchScalarGridSpec(
            num_scalar_prefetch=0,
            grid=(T // tc,),
            in_specs=[
                pl.BlockSpec((tc, Bp, I), lambda c: (c, 0, 0)),
                pl.BlockSpec((I, 4 * hp), lambda c: (0, 0)),
                pl.BlockSpec((hp, 4 * hp), lambda c: (0, 0)),
                pl.BlockSpec((1, 4 * hp), lambda c: (0, 0)),
                pl.BlockSpec((hp, O), lambda c: (0, 0)),
                pl.BlockSpec((1, O), lambda c: (0, 0)),
            ],
            out_specs=pl.BlockSpec((Bp, O), lambda c: (0, 0)),
            scratch_shapes=[
                pltpu.VMEM((Bp, hp), jnp.float32),
                pltpu.VMEM((Bp, hp), jnp.float32),
            ],
        ),
        compiler_params=pltpu.CompilerParams(
            dimension_semantics=("arbitrary",)),
    )(x_tm, wih_t, whh_t, b, wout_t, bout)


# ---------------------------------------------------------------------------
# parameter padding (exact: padded hidden units remain identically zero)
# ---------------------------------------------------------------------------
def _pad_gate_cols(w, H, Hp):
    """(..., 4H) -> (..., 4Hp), zero-padding each of the 4 gate blocks."""
    if Hp == H:
        return w
    lead = w.shape[:-1]
    w4 = w.reshape(lead + (4, H))
    pad = [(0, 0)] * (w4.ndim - 1) + [(0, Hp - H)]
    return jnp.pad(w4, pad).reshape(lead + (4 * Hp,))


def prepare_padded_params(params, hidden_size):
    H = hidden_size
    Hp = _round_up(H, 128)
    padded = {"lstm": [], "Hp": Hp}
    for li, layer in enumerate(params["lstm"]):
        wih_t = _pad_gate_cols(layer["wih_t"], H, Hp)   # (in, 4Hp)
        whh_t = _pad_gate_cols(layer["whh_t"], H, Hp)   # (H, 4Hp)
        bias = _pad_gate_cols(layer["b"], H, Hp)        # (1, 4Hp)
        whh_t = jnp.pad(whh_t, ((0, Hp - H), (0, 0)))   # (Hp, 4Hp)
        if li > 0:
            wih_t = jnp.pad(wih_t, ((0, Hp - H), (0, 0)))  # (Hp, 4Hp)
        padded["lstm"].append({"wih_t": wih_t, "whh_t": whh_t, "b": bias})
    padded["head"] = {
        "w_t": jnp.pad(params["head"]["w_t"], ((0, Hp - H), (0, 0))),  # (Hp, O)
        "b": params["head"]["b"],                                      # (1, O)
    }
    return padded


# ---------------------------------------------------------------------------
# forward
# ---------------------------------------------------------------------------
def ori_lstm_forward(x, params, hidden_size):
    """x: (B, T, input_size) batch_first -- same as the PyTorch module."""
    B, T, _ = x.shape
    Bp = _round_up(B, 8)
    padded = prepare_padded_params(params, hidden_size)
    Hp = padded["Hp"]

    x_tm = jnp.transpose(x, (1, 0, 2))                  # (T, B, I) time-major
    if Bp != B:
        x_tm = jnp.pad(x_tm, ((0, 0), (0, Bp - B), (0, 0)))

    seq = x_tm
    layers = padded["lstm"]
    for layer in layers[:-1]:
        seq = lstm_layer_seq_pallas(seq, layer["wih_t"], layer["whh_t"],
                                    layer["b"], Hp)
    last = layers[-1]
    out_p = lstm_last_layer_head_pallas(seq, last["wih_t"], last["whh_t"],
                                        last["b"], padded["head"]["w_t"],
                                        padded["head"]["b"], Hp)
    return out_p[:B, :]


# ---------------------------------------------------------------------------
# Pure-JAX reference (for correctness check)
# ---------------------------------------------------------------------------
def _lstm_layer_ref(x_tm, wih_t, whh_t, b):
    B = x_tm.shape[1]
    H = whh_t.shape[0]

    def step(carry, x_t):
        h, c = carry
        gates = x_t @ wih_t + h @ whh_t + b
        i_g = jax.nn.sigmoid(gates[:, :H])
        f_g = jax.nn.sigmoid(gates[:, H:2 * H])
        g_g = jnp.tanh(gates[:, 2 * H:3 * H])
        o_g = jax.nn.sigmoid(gates[:, 3 * H:])
        c = f_g * c + i_g * g_g
        h = o_g * jnp.tanh(c)
        return (h, c), h

    init = (jnp.zeros((B, H), x_tm.dtype), jnp.zeros((B, H), x_tm.dtype))
    _, ys = lax.scan(step, init, x_tm)
    return ys


def ori_lstm_ref(x, params):
    x_tm = jnp.transpose(x, (1, 0, 2))
    seq = x_tm
    for layer in params["lstm"]:
        seq = _lstm_layer_ref(seq, layer["wih_t"], layer["whh_t"], layer["b"])
    h_last = seq[-1]
    logits = h_last @ params["head"]["w_t"] + params["head"]["b"]
    return jax.nn.softmax(logits, axis=-1)


# ---------------------------------------------------------------------------
# Parameter init (deterministic, PyTorch-style uniform(-1/sqrt(H), 1/sqrt(H)))
# ---------------------------------------------------------------------------
def init_params(key, input_size, hidden_size, num_layer, output_size):
    params = {"lstm": [], "head": {}}
    H = hidden_size
    k = 1.0 / jnp.sqrt(jnp.float32(H))
    for l in range(num_layer):
        in_sz = input_size if l == 0 else H
        key, k1, k2, k3, k4 = jax.random.split(key, 5)
        w_ih = jax.random.uniform(k1, (4 * H, in_sz), jnp.float32, -k, k)
        w_hh = jax.random.uniform(k2, (4 * H, H), jnp.float32, -k, k)
        b_ih = jax.random.uniform(k3, (4 * H,), jnp.float32, -k, k)
        b_hh = jax.random.uniform(k4, (4 * H,), jnp.float32, -k, k)
        params["lstm"].append({
            "wih_t": w_ih.T,                           # (in_sz, 4H)
            "whh_t": w_hh.T,                           # (H, 4H)
            "b": (b_ih + b_hh)[None, :],               # (1, 4H)
        })
    key, k5, k6 = jax.random.split(key, 3)
    kw = 1.0 / jnp.sqrt(jnp.float32(H))
    w_out = jax.random.uniform(k5, (output_size, H), jnp.float32, -kw, kw)
    b_out = jax.random.uniform(k6, (output_size,), jnp.float32, -kw, kw)
    params["head"]["w_t"] = w_out.T                    # (H, O)
    params["head"]["b"] = b_out[None, :]               # (1, O)
    return params


# ---------------------------------------------------------------------------
if __name__ == "__main__":
    batch, seq_len = 2, 8
    input_size, hidden_size, num_layer, output_size = 16, 32, 2, 8

    key = jax.random.PRNGKey(0)
    key, xk = jax.random.split(key)
    x = jax.random.normal(xk, (batch, seq_len, input_size), jnp.float32)

    params = init_params(key, input_size, hidden_size, num_layer, output_size)

    out = jax.block_until_ready(ori_lstm_forward(x, params, hidden_size))
    ref = jax.block_until_ready(ori_lstm_ref(x, params))

    assert out.shape == (batch, output_size)
    assert jnp.allclose(out, ref, rtol=1e-5, atol=1e-5), "mismatch vs reference"
    print("KERNEL_OK")
</pallas_src>

<mosaic_0001>
module attributes {stable_mosaic.version = 11 : i64} {
  func.func @_lstm_seq_chunk_kernel(%arg0: i32, %arg1: memref<8x8x16xf32, #tpu.memory_space<vmem>>, %arg2: memref<16x512xf32, #tpu.memory_space<vmem>>, %arg3: memref<128x512xf32, #tpu.memory_space<vmem>>, %arg4: memref<1x512xf32, #tpu.memory_space<vmem>>, %arg5: memref<8x8x128xf32, #tpu.memory_space<vmem>>, %arg6: memref<8x128xf32, #tpu.memory_space<vmem>>, %arg7: memref<8x128xf32, #tpu.memory_space<vmem>>) attributes {dimension_semantics = [#tpu.dimension_semantics<arbitrary>], iteration_bounds = array<i64: 1>, scalar_prefetch = 0 : i64, scratch_operands = 2 : i64, tpu.core_type = #tpu.core_type<tc>, window_params = [{transform_indices = @transform_0, window_bounds = array<i64: 8, 8, 16>}, {pipeline_mode = #tpu.pipeline_mode<synchronous>, transform_indices = @transform_1, window_bounds = array<i64: 16, 512>}, {pipeline_mode = #tpu.pipeline_mode<synchronous>, transform_indices = @transform_2, window_bounds = array<i64: 128, 512>}, {pipeline_mode = #tpu.pipeline_mode<synchronous>, transform_indices = @transform_3, window_bounds = array<i64: 1, 512>}, {transform_indices = @transform_4, window_bounds = array<i64: 8, 8, 128>}]} {
    %c0_i32 = arith.constant 0 : i32
    %0 = arith.cmpi eq, %arg0, %c0_i32 : i32
    %1 = arith.extui %0 : i1 to i32
    %c0_i32_0 = arith.constant 0 : i32
    %2 = arith.cmpi ne, %1, %c0_i32_0 : i32
    scf.if %2 {
      %cst_66 = arith.constant 0.000000e+00 : f32
      %272 = vector.broadcast %cst_66 : f32 to vector<8x128xf32>
      %c0_67 = arith.constant 0 : index
      %c0_68 = arith.constant 0 : index
      %273 = vector.load %arg6[%c0_67, %c0_68] : memref<8x128xf32, #tpu.memory_space<vmem>>, vector<8x128xf32>
      tpu.vector_store %arg6[%c0_67, %c0_68], %272 {strides = array<i32>} : memref<8x128xf32, #tpu.memory_space<vmem>>, vector<8x128xf32>,
      %cst_69 = arith.constant 0.000000e+00 : f32
      %274 = vector.broadcast %cst_69 : f32 to vector<8x128xf32>
      %c0_70 = arith.constant 0 : index
      %c0_71 = arith.constant 0 : index
      %275 = vector.load %arg7[%c0_70, %c0_71] : memref<8x128xf32, #tpu.memory_space<vmem>>, vector<8x128xf32>
      tpu.vector_store %arg7[%c0_70, %c0_71], %274 {strides = array<i32>} : memref<8x128xf32, #tpu.memory_space<vmem>>, vector<8x128xf32>,
    } else {
    }
    %c0 = arith.constant 0 : index
    %c0_1 = arith.constant 0 : index
    %c0_2 = arith.constant 0 : index
    %3 = vector.load %arg1[%c0, %c0_1, %c0_2] : memref<8x8x16xf32, #tpu.memory_space<vmem>>, vector<8x8x16xf32>
    %4 = vector.shape_cast %3 : vector<8x8x16xf32> to vector<64x16xf32>
    %c0_3 = arith.constant 0 : index
    %c0_4 = arith.constant 0 : index
    %5 = vector.load %arg2[%c0_3, %c0_4] : memref<16x512xf32, #tpu.memory_space<vmem>>, vector<16x512xf32>
    %cst = arith.constant dense<0.000000e+00> : vector<64x512xf32>
    %6 = tpu.matmul %4, %5, %cst {dimension_numbers = #tpu.dot_dimension_numbers<[1], [0], [0], [1], [0, 0, 1, 1], [], []>} : vector<64x16xf32>, vector<16x512xf32>, vector<64x512xf32> -> vector<64x512xf32>
    %c0_5 = arith.constant 0 : index
    %c0_6 = arith.constant 0 : index
    %7 = vector.load %arg4[%c0_5, %c0_6] : memref<1x512xf32, #tpu.memory_space<vmem>>, vector<1x512xf32>
    %8 = vector.broadcast %7 : vector<1x512xf32> to vector<64x512xf32>
    %9 = arith.addf %6, %8 : vector<64x512xf32>
    %10 = vector.shape_cast %9 : vector<64x512xf32> to vector<8x8x512xf32>
    %c0_7 = arith.constant 0 : index
    %c0_8 = arith.constant 0 : index
    %11 = vector.load %arg3[%c0_7, %c0_8] : memref<128x512xf32, #tpu.memory_space<vmem>>, vector<128x512xf32>
    %c0_9 = arith.constant 0 : index
    %c0_10 = arith.constant 0 : index
    %12 = vector.load %arg6[%c0_9, %c0_10] : memref<8x128xf32, #tpu.memory_space<vmem>>, vector<8x128xf32>
    %c0_11 = arith.constant 0 : index
    %c0_12 = arith.constant 0 : index
    %13 = vector.load %arg7[%c0_11, %c0_12] : memref<8x128xf32, #tpu.memory_space<vmem>>, vector<8x128xf32>
    %14 = vector.extract_strided_slice %10 {offsets = [0, 0, 0], sizes = [1, 8, 512], strides = [1, 1, 1]} : vector<8x8x512xf32> to vector<1x8x512xf32>
    %15 = vector.shape_cast %14 : vector<1x8x512xf32> to vector<8x512xf32>
    %cst_13 = arith.constant dense<0.000000e+00> : vector<8x512xf32>
    %16 = tpu.matmul %12, %11, %cst_13 {dimension_numbers = #tpu.dot_dimension_numbers<[1], [0], [0], [1], [0, 0, 1, 1], [], []>} : vector<8x128xf32>, vector<128x512xf32>, vector<8x512xf32> -> vector<8x512xf32>
    %17 = arith.addf %15, %16 : vector<8x512xf32>
    %18 = vector.extract_strided_slice %17 {offsets = [0, 0], sizes = [8, 128], strides = [1, 1]} : vector<8x512xf32> to vector<8x128xf32>
    %19 = arith.negf %18 : vector<8x128xf32>
    %20 = math.exp %19 : vector<8x128xf32>
    %cst_14 = arith.constant 1.000000e+00 : f32
    %21 = vector.broadcast %cst_14 : f32 to vector<8x128xf32>
    %22 = arith.addf %21, %20 : vector<8x128xf32>
    %23 = arith.divf %21, %22 : vector<8x128xf32>
    %24 = vector.extract_strided_slice %17 {offsets = [0, 128], sizes = [8, 128], strides = [1, 1]} : vector<8x512xf32> to vector<8x128xf32>
    %25 = arith.negf %24 : vector<8x128xf32>
    %26 = math.exp %25 : vector<8x128xf32>
    %cst_15 = arith.constant 1.000000e+00 : f32
    %27 = vector.broadcast %cst_15 : f32 to vector<8x128xf32>
    %28 = arith.addf %27, %26 : vector<8x128xf32>
    %29 = arith.divf %27, %28 : vector<8x128xf32>
    %30 = vector.extract_strided_slice %17 {offsets = [0, 256], sizes = [8, 128], strides = [1, 1]} : vector<8x512xf32> to vector<8x128xf32>
    %31 = math.tanh %30 : vector<8x128xf32>
    %32 = vector.extract_strided_slice %17 {offsets = [0, 384], sizes = [8, 128], strides = [1, 1]} : vector<8x512xf32> to vector<8x128xf32>
    %33 = arith.negf %32 : vector<8x128xf32>
    %34 = math.exp %33 : vector<8x128xf32>
    %cst_16 = arith.constant 1.000000e+00 : f32
    %35 = vector.broadcast %cst_16 : f32 to vector<8x128xf32>
    %36 = arith.addf %35, %34 : vector<8x128xf32>
    %37 = arith.divf %35, %36 : vector<8x128xf32>
    %38 = arith.mulf %29, %13 : vector<8x128xf32>
    %39 = arith.mulf %23, %31 : vector<8x128xf32>
    %40 = arith.addf %38, %39 : vector<8x128xf32>
    %41 = math.tanh %40 : vector<8x128xf32>
    %42 = arith.mulf %37, %41 : vector<8x128xf32>
    %c0_17 = arith.constant 0 : index
    %c0_18 = arith.constant 0 : index
    %c0_19 = arith.constant 0 : index
    %43 = vector.load %arg5[%c0_17, %c0_18, %c0_19] : memref<8x8x128xf32, #tpu.memory_space<vmem>>, vector<1x8x128xf32>
    %44 = vector.shape_cast %43 : vector<1x8x128xf32> to vector<8x128xf32>
    %45 = vector.shape_cast %42 : vector<8x128xf32> to vector<1x8x128xf32>
    tpu.vector_store %arg5[%c0_17, %c0_18, %c0_19], %45 {strides = array<i32>} : memref<8x8x128xf32, #tpu.memory_space<vmem>>, vector<1x8x128xf32>,
    %46 = vector.extract_strided_slice %10 {offsets = [1, 0, 0], sizes = [1, 8, 512], strides = [1, 1, 1]} : vector<8x8x512xf32> to vector<1x8x512xf32>
    %47 = vector.shape_cast %46 : vector<1x8x512xf32> to vector<8x512xf32>
    %cst_20 = arith.constant dense<0.000000e+00> : vector<8x512xf32>
    %48 = tpu.matmul %42, %11, %cst_20 {dimension_numbers = #tpu.dot_dimension_numbers<[1], [0], [0], [1], [0, 0, 1, 1], [], []>} : vector<8x128xf32>, vector<128x512xf32>, vector<8x512xf32> -> vector<8x512xf32>
    %49 = arith.addf %47, %48 : vector<8x512xf32>
    %50 = vector.extract_strided_slice %49 {offsets = [0, 0], sizes = [8, 128], strides = [1, 1]} : vector<8x512xf32> to vector<8x128xf32>
    %51 = arith.negf %50 : vector<8x128xf32>
    %52 = math.exp %51 : vector<8x128xf32>
    %cst_21 = arith.constant 1.000000e+00 : f32
    %53 = vector.broadcast %cst_21 : f32 to vector<8x128xf32>
    %54 = arith.addf %53, %52 : vector<8x128xf32>
    %55 = arith.divf %53, %54 : vector<8x128xf32>
    %56 = vector.extract_strided_slice %49 {offsets = [0, 128], sizes = [8, 128], strides = [1, 1]} : vector<8x512xf32> to vector<8x128xf32>
    %57 = arith.negf %56 : vector<8x128xf32>
    %58 = math.exp %57 : vector<8x128xf32>
    %cst_22 = arith.constant 1.000000e+00 : f32
    %59 = vector.broadcast %cst_22 : f32 to vector<8x128xf32>
    %60 = arith.addf %59, %58 : vector<8x128xf32>
    %61 = arith.divf %59, %60 : vector<8x128xf32>
    %62 = vector.extract_strided_slice %49 {offsets = [0, 256], sizes = [8, 128], strides = [1, 1]} : vector<8x512xf32> to vector<8x128xf32>
    %63 = math.tanh %62 : vector<8x128xf32>
    %64 = vector.extract_strided_slice %49 {offsets = [0, 384], sizes = [8, 128], strides = [1, 1]} : vector<8x512xf32> to vector<8x128xf32>
    %65 = arith.negf %64 : vector<8x128xf32>
    %66 = math.exp %65 : vector<8x128xf32>
    %cst_23 = arith.constant 1.000000e+00 : f32
    %67 = vector.broadcast %cst_23 : f32 to vector<8x128xf32>
    %68 = arith.addf %67, %66 : vector<8x128xf32>
    %69 = arith.divf %67, %68 : vector<8x128xf32>
    %70 = arith.mulf %61, %40 : vector<8x128xf32>
    %71 = arith.mulf %55, %63 : vector<8x128xf32>
    %72 = arith.addf %70, %71 : vector<8x128xf32>
    %73 = math.tanh %72 : vector<8x128xf32>
    %74 = arith.mulf %69, %73 : vector<8x128xf32>
    %c1 = arith.constant 1 : index
    %c0_24 = arith.constant 0 : index
    %c0_25 = arith.constant 0 : index
    %75 = vector.load %arg5[%c1, %c0_24, %c0_25] : memref<8x8x128xf32, #tpu.memory_space<vmem>>, vector<1x8x128xf32>
    %76 = vector.shape_cast %75 : vector<1x8x128xf32> to vector<8x128xf32>
    %77 = vector.shape_cast %74 : vector<8x128xf32> to vector<1x8x128xf32>
    tpu.vector_store %arg5[%c1, %c0_24, %c0_25], %77 {strides = array<i32>} : memref<8x8x128xf32, #tpu.memory_space<vmem>>, vector<1x8x128xf32>,
    %78 = vector.extract_strided_slice %10 {offsets = [2, 0, 0], sizes = [1, 8, 512], strides = [1, 1, 1]} : vector<8x8x512xf32> to vector<1x8x512xf32>
    %79 = vector.shape_cast %78 : vector<1x8x512xf32> to vector<8x512xf32>
    %cst_26 = arith.constant dense<0.000000e+00> : vector<8x512xf32>
    %80 = tpu.matmul %74, %11, %cst_26 {dimension_numbers = #tpu.dot_dimension_numbers<[1], [0], [0], [1], [0, 0, 1, 1], [], []>} : vector<8x128xf32>, vector<128x512xf32>, vector<8x512xf32> -> vector<8x512xf32>
    %81 = arith.addf %79, %80 : vector<8x512xf32>
    %82 = vector.extract_strided_slice %81 {offsets = [0, 0], sizes = [8, 128], strides = [1, 1]} : vector<8x512xf32> to vector<8x128xf32>
    %83 = arith.negf %82 : vector<8x128xf32>
    %84 = math.exp %83 : vector<8x128xf32>
    %cst_27 = arith.constant 1.000000e+00 : f32
    %85 = vector.broadcast %cst_27 : f32 to vector<8x128xf32>
    %86 = arith.addf %85, %84 : vector<8x128xf32>
    %87 = arith.divf %85, %86 : vector<8x128xf32>
    %88 = vector.extract_strided_slice %81 {offsets = [0, 128], sizes = [8, 128], strides = [1, 1]} : vector<8x512xf32> to vector<8x128xf32>
    %89 = arith.negf %88 : vector<8x128xf32>
    %90 = math.exp %89 : vector<8x128xf32>
    %cst_28 = arith.constant 1.000000e+00 : f32
    %91 = vector.broadcast %cst_28 : f32 to vector<8x128xf32>
    %92 = arith.addf %91, %90 : vector<8x128xf32>
    %93 = arith.divf %91, %92 : vector<8x128xf32>
    %94 = vector.extract_strided_slice %81 {offsets = [0, 256], sizes = [8, 128], strides = [1, 1]} : vector<8x512xf32> to vector<8x128xf32>
    %95 = math.tanh %94 : vector<8x128xf32>
    %96 = vector.extract_strided_slice %81 {offsets = [0, 384], sizes = [8, 128], strides = [1, 1]} : vector<8x512xf32> to vector<8x128xf32>
    %97 = arith.negf %96 : vector<8x128xf32>
    %98 = math.exp %97 : vector<8x128xf32>
    %cst_29 = arith.constant 1.000000e+00 : f32
    %99 = vector.broadcast %cst_29 : f32 to vector<8x128xf32>
    %100 = arith.addf %99, %98 : vector<8x128xf32>
    %101 = arith.divf %99, %100 : vector<8x128xf32>
    %102 = arith.mulf %93, %72 : vector<8x128xf32>
    %103 = arith.mulf %87, %95 : vector<8x128xf32>
    %104 = arith.addf %102, %103 : vector<8x128xf32>
    %105 = math.tanh %104 : vector<8x128xf32>
    %106 = arith.mulf %101, %105 : vector<8x128xf32>
    %c2 = arith.constant 2 : index
    %c0_30 = arith.constant 0 : index
    %c0_31 = arith.constant 0 : index
    %107 = vector.load %arg5[%c2, %c0_30, %c0_31] : memref<8x8x128xf32, #tpu.memory_space<vmem>>, vector<1x8x128xf32>
    %108 = vector.shape_cast %107 : vector<1x8x128xf32> to vector<8x128xf32>
    %109 = vector.shape_cast %106 : vector<8x128xf32> to vector<1x8x128xf32>
    tpu.vector_store %arg5[%c2, %c0_30, %c0_31], %109 {strides = array<i32>} : memref<8x8x128xf32, #tpu.memory_space<vmem>>, vector<1x8x128xf32>,
    %110 = vector.extract_strided_slice %10 {offsets = [3, 0, 0], sizes = [1, 8, 512], strides = [1, 1, 1]} : vector<8x8x512xf32> to vector<1x8x512xf32>
    %111 = vector.shape_cast %110 : vector<1x8x512xf32> to vector<8x512xf32>
    %cst_32 = arith.constant dense<0.000000e+00> : vector<8x512xf32>
    %112 = tpu.matmul %106, %11, %cst_32 {dimension_numbers = #tpu.dot_dimension_numbers<[1], [0], [0], [1], [0, 0, 1, 1], [], []>} : vector<8x128xf32>, vector<128x512xf32>, vector<8x512xf32> -> vector<8x512xf32>
    %113 = arith.addf %111, %112 : vector<8x512xf32>
    %114 = vector.extract_strided_slice %113 {offsets = [0, 0], sizes = [8, 128], strides = [1, 1]} : vector<8x512xf32> to vector<8x128xf32>
    %115 = arith.negf %114 : vector<8x128xf32>
    %116 = math.exp %115 : vector<8x128xf32>
    %cst_33 = arith.constant 1.000000e+00 : f32
    %117 = vector.broadcast %cst_33 : f32 to vector<8x128xf32>
    %118 = arith.addf %117, %116 : vector<8x128xf32>
    %119 = arith.divf %117, %118 : vector<8x128xf32>
    %120 = vector.extract_strided_slice %113 {offsets = [0, 128], sizes = [8, 128], strides = [1, 1]} : vector<8x512xf32> to vector<8x128xf32>
    %121 = arith.negf %120 : vector<8x128xf32>
    %122 = math.exp %121 : vector<8x128xf32>
    %cst_34 = arith.constant 1.000000e+00 : f32
    %123 = vector.broadcast %cst_34 : f32 to vector<8x128xf32>
    %124 = arith.addf %123, %122 : vector<8x128xf32>
    %125 = arith.divf %123, %124 : vector<8x128xf32>
    %126 = vector.extract_strided_slice %113 {offsets = [0, 256], sizes = [8, 128], strides = [1, 1]} : vector<8x512xf32> to vector<8x128xf32>
    %127 = math.tanh %126 : vector<8x128xf32>
    %128 = vector.extract_strided_slice %113 {offsets = [0, 384], sizes = [8, 128], strides = [1, 1]} : vector<8x512xf32> to vector<8x128xf32>
    %129 = arith.negf %128 : vector<8x128xf32>
    %130 = math.exp %129 : vector<8x128xf32>
    %cst_35 = arith.constant 1.000000e+00 : f32
    %131 = vector.broadcast %cst_35 : f32 to vector<8x128xf32>
    %132 = arith.addf %131, %130 : vector<8x128xf32>
    %133 = arith.divf %131, %132 : vector<8x128xf32>
    %134 = arith.mulf %125, %104 : vector<8x128xf32>
    %135 = arith.mulf %119, %127 : vector<8x128xf32>
    %136 = arith.addf %134, %135 : vector<8x128xf32>
    %137 = math.tanh %136 : vector<8x128xf32>
    %138 = arith.mulf %133, %137 : vector<8x128xf32>
    %c3 = arith.constant 3 : index
    %c0_36 = arith.constant 0 : index
    %c0_37 = arith.constant 0 : index
    %139 = vector.load %arg5[%c3, %c0_36, %c0_37] : memref<8x8x128xf32, #tpu.memory_space<vmem>>, vector<1x8x128xf32>
    %140 = vector.shape_cast %139 : vector<1x8x128xf32> to vector<8x128xf32>
    %141 = vector.shape_cast %138 : vector<8x128xf32> to vector<1x8x128xf32>
    tpu.vector_store %arg5[%c3, %c0_36, %c0_37], %141 {strides = array<i32>} : memref<8x8x128xf32, #tpu.memory_space<vmem>>, vector<1x8x128xf32>,
    %142 = vector.extract_strided_slice %10 {offsets = [4, 0, 0], sizes = [1, 8, 512], strides = [1, 1, 1]} : vector<8x8x512xf32> to vector<1x8x512xf32>
    %143 = vector.shape_cast %142 : vector<1x8x512xf32> to vector<8x512xf32>
    %cst_38 = arith.constant dense<0.000000e+00> : vector<8x512xf32>
    %144 = tpu.matmul %138, %11, %cst_38 {dimension_numbers = #tpu.dot_dimension_numbers<[1], [0], [0], [1], [0, 0, 1, 1], [], []>} : vector<8x128xf32>, vector<128x512xf32>, vector<8x512xf32> -> vector<8x512xf32>
    %145 = arith.addf %143, %144 : vector<8x512xf32>
    %146 = vector.extract_strided_slice %145 {offsets = [0, 0], sizes = [8, 128], strides = [1, 1]} : vector<8x512xf32> to vector<8x128xf32>
    %147 = arith.negf %146 : vector<8x128xf32>
    %148 = math.exp %147 : vector<8x128xf32>
    %cst_39 = arith.constant 1.000000e+00 : f32
    %149 = vector.broadcast %cst_39 : f32 to vector<8x128xf32>
    %150 = arith.addf %149, %148 : vector<8x128xf32>
    %151 = arith.divf %149, %150 : vector<8x128xf32>
    %152 = vector.extract_strided_slice %145 {offsets = [0, 128], sizes = [8, 128], strides = [1, 1]} : vector<8x512xf32> to vector<8x128xf32>
    %153 = arith.negf %152 : vector<8x128xf32>
    %154 = math.exp %153 : vector<8x128xf32>
    %cst_40 = arith.constant 1.000000e+00 : f32
    %155 = vector.broadcast %cst_40 : f32 to vector<8x128xf32>
    %156 = arith.addf %155, %154 : vector<8x128xf32>
    %157 = arith.divf %155, %156 : vector<8x128xf32>
    %158 = vector.extract_strided_slice %145 {offsets = [0, 256], sizes = [8, 128], strides = [1, 1]} : vector<8x512xf32> to vector<8x128xf32>
    %159 = math.tanh %158 : vector<8x128xf32>
    %160 = vector.extract_strided_slice %145 {offsets = [0, 384], sizes = [8, 128], strides = [1, 1]} : vector<8x512xf32> to vector<8x128xf32>
    %161 = arith.negf %160 : vector<8x128xf32>
    %162 = math.exp %161 : vector<8x128xf32>
    %cst_41 = arith.constant 1.000000e+00 : f32
    %163 = vector.broadcast %cst_41 : f32 to vector<8x128xf32>
    %164 = arith.addf %163, %162 : vector<8x128xf32>
    %165 = arith.divf %163, %164 : vector<8x128xf32>
    %166 = arith.mulf %157, %136 : vector<8x128xf32>
    %167 = arith.mulf %151, %159 : vector<8x128xf32>
    %168 = arith.addf %166, %167 : vector<8x128xf32>
    %169 = math.tanh %168 : vector<8x128xf32>
    %170 = arith.mulf %165, %169 : vector<8x128xf32>
    %c4 = arith.constant 4 : index
    %c0_42 = arith.constant 0 : index
    %c0_43 = arith.constant 0 : index
    %171 = vector.load %arg5[%c4, %c0_42, %c0_43] : memref<8x8x128xf32, #tpu.memory_space<vmem>>, vector<1x8x128xf32>
    %172 = vector.shape_cast %171 : vector<1x8x128xf32> to vector<8x128xf32>
    %173 = vector.shape_cast %170 : vector<8x128xf32> to vector<1x8x128xf32>
    tpu.vector_store %arg5[%c4, %c0_42, %c0_43], %173 {strides = array<i32>} : memref<8x8x128xf32, #tpu.memory_space<vmem>>, vector<1x8x128xf32>,
    %174 = vector.extract_strided_slice %10 {offsets = [5, 0, 0], sizes = [1, 8, 512], strides = [1, 1, 1]} : vector<8x8x512xf32> to vector<1x8x512xf32>
    %175 = vector.shape_cast %174 : vector<1x8x512xf32> to vector<8x512xf32>
    %cst_44 = arith.constant dense<0.000000e+00> : vector<8x512xf32>
    %176 = tpu.matmul %170, %11, %cst_44 {dimension_numbers = #tpu.dot_dimension_numbers<[1], [0], [0], [1], [0, 0, 1, 1], [], []>} : vector<8x128xf32>, vector<128x512xf32>, vector<8x512xf32> -> vector<8x512xf32>
    %177 = arith.addf %175, %176 : vector<8x512xf32>
    %178 = vector.extract_strided_slice %177 {offsets = [0, 0], sizes = [8, 128], strides = [1, 1]} : vector<8x512xf32> to vector<8x128xf32>
    %179 = arith.negf %178 : vector<8x128xf32>
    %180 = math.exp %179 : vector<8x128xf32>
    %cst_45 = arith.constant 1.000000e+00 : f32
    %181 = vector.broadcast %cst_45 : f32 to vector<8x128xf32>
    %182 = arith.addf %181, %180 : vector<8x128xf32>
    %183 = arith.divf %181, %182 : vector<8x128xf32>
    %184 = vector.extract_strided_slice %177 {offsets = [0, 128], sizes = [8, 128], strides = [1, 1]} : vector<8x512xf32> to vector<8x128xf32>
    %185 = arith.negf %184 : vector<8x128xf32>
    %186 = math.exp %185 : vector<8x128xf32>
    %cst_46 = arith.constant 1.000000e+00 : f32
    %187 = vector.broadcast %cst_46 : f32 to vector<8x128xf32>
    %188 = arith.addf %187, %186 : vector<8x128xf32>
    %189 = arith.divf %187, %188 : vector<8x128xf32>
    %190 = vector.extract_strided_slice %177 {offsets = [0, 256], sizes = [8, 128], strides = [1, 1]} : vector<8x512xf32> to vector<8x128xf32>
    %191 = math.tanh %190 : vector<8x128xf32>
    %192 = vector.extract_strided_slice %177 {offsets = [0, 384], sizes = [8, 128], strides = [1, 1]} : vector<8x512xf32> to vector<8x128xf32>
    %193 = arith.negf %192 : vector<8x128xf32>
    %194 = math.exp %193 : vector<8x128xf32>
    %cst_47 = arith.constant 1.000000e+00 : f32
    %195 = vector.broadcast %cst_47 : f32 to vector<8x128xf32>
    %196 = arith.addf %195, %194 : vector<8x128xf32>
    %197 = arith.divf %195, %196 : vector<8x128xf32>
    %198 = arith.mulf %189, %168 : vector<8x128xf32>
    %199 = arith.mulf %183, %191 : vector<8x128xf32>
    %200 = arith.addf %198, %199 : vector<8x128xf32>
    %201 = math.tanh %200 : vector<8x128xf32>
    %202 = arith.mulf %197, %201 : vector<8x128xf32>
    %c5 = arith.constant 5 : index
    %c0_48 = arith.constant 0 : index
    %c0_49 = arith.constant 0 : index
    %203 = vector.load %arg5[%c5, %c0_48, %c0_49] : memref<8x8x128xf32, #tpu.memory_space<vmem>>, vector<1x8x128xf32>
    %204 = vector.shape_cast %203 : vector<1x8x128xf32> to vector<8x128xf32>
    %205 = vector.shape_cast %202 : vector<8x128xf32> to vector<1x8x128xf32>
    tpu.vector_store %arg5[%c5, %c0_48, %c0_49], %205 {strides = array<i32>} : memref<8x8x128xf32, #tpu.memory_space<vmem>>, vector<1x8x128xf32>,
    %206 = vector.extract_strided_slice %10 {offsets = [6, 0, 0], sizes = [1, 8, 512], strides = [1, 1, 1]} : vector<8x8x512xf32> to vector<1x8x512xf32>
    %207 = vector.shape_cast %206 : vector<1x8x512xf32> to vector<8x512xf32>
    %cst_50 = arith.constant dense<0.000000e+00> : vector<8x512xf32>
    %208 = tpu.matmul %202, %11, %cst_50 {dimension_numbers = #tpu.dot_dimension_numbers<[1], [0], [0], [1], [0, 0, 1, 1], [], []>} : vector<8x128xf32>, vector<128x512xf32>, vector<8x512xf32> -> vector<8x512xf32>
    %209 = arith.addf %207, %208 : vector<8x512xf32>
    %210 = vector.extract_strided_slice %209 {offsets = [0, 0], sizes = [8, 128], strides = [1, 1]} : vector<8x512xf32> to vector<8x128xf32>
    %211 = arith.negf %210 : vector<8x128xf32>
    %212 = math.exp %211 : vector<8x128xf32>
    %cst_51 = arith.constant 1.000000e+00 : f32
    %213 = vector.broadcast %cst_51 : f32 to vector<8x128xf32>
    %214 = arith.addf %213, %212 : vector<8x128xf32>
    %215 = arith.divf %213, %214 : vector<8x128xf32>
    %216 = vector.extract_strided_slice %209 {offsets = [0, 128], sizes = [8, 128], strides = [1, 1]} : vector<8x512xf32> to vector<8x128xf32>
    %217 = arith.negf %216 : vector<8x128xf32>
    %218 = math.exp %217 : vector<8x128xf32>
    %cst_52 = arith.constant 1.000000e+00 : f32
    %219 = vector.broadcast %cst_52 : f32 to vector<8x128xf32>
    %220 = arith.addf %219, %218 : vector<8x128xf32>
    %221 = arith.divf %219, %220 : vector<8x128xf32>
    %222 = vector.extract_strided_slice %209 {offsets = [0, 256], sizes = [8, 128], strides = [1, 1]} : vector<8x512xf32> to vector<8x128xf32>
    %223 = math.tanh %222 : vector<8x128xf32>
    %224 = vector.extract_strided_slice %209 {offsets = [0, 384], sizes = [8, 128], strides = [1, 1]} : vector<8x512xf32> to vector<8x128xf32>
    %225 = arith.negf %224 : vector<8x128xf32>
    %226 = math.exp %225 : vector<8x128xf32>
    %cst_53 = arith.constant 1.000000e+00 : f32
    %227 = vector.broadcast %cst_53 : f32 to vector<8x128xf32>
    %228 = arith.addf %227, %226 : vector<8x128xf32>
    %229 = arith.divf %227, %228 : vector<8x128xf32>
    %230 = arith.mulf %221, %200 : vector<8x128xf32>
    %231 = arith.mulf %215, %223 : vector<8x128xf32>
    %232 = arith.addf %230, %231 : vector<8x128xf32>
    %233 = math.tanh %232 : vector<8x128xf32>
    %234 = arith.mulf %229, %233 : vector<8x128xf32>
    %c6 = arith.constant 6 : index
    %c0_54 = arith.constant 0 : index
    %c0_55 = arith.constant 0 : index
    %235 = vector.load %arg5[%c6, %c0_54, %c0_55] : memref<8x8x128xf32, #tpu.memory_space<vmem>>, vector<1x8x128xf32>
    %236 = vector.shape_cast %235 : vector<1x8x128xf32> to vector<8x128xf32>
    %237 = vector.shape_cast %234 : vector<8x128xf32> to vector<1x8x128xf32>
    tpu.vector_store %arg5[%c6, %c0_54, %c0_55], %237 {strides = array<i32>} : memref<8x8x128xf32, #tpu.memory_space<vmem>>, vector<1x8x128xf32>,
    %238 = vector.extract_strided_slice %10 {offsets = [7, 0, 0], sizes = [1, 8, 512], strides = [1, 1, 1]} : vector<8x8x512xf32> to vector<1x8x512xf32>
    %239 = vector.shape_cast %238 : vector<1x8x512xf32> to vector<8x512xf32>
    %cst_56 = arith.constant dense<0.000000e+00> : vector<8x512xf32>
    %240 = tpu.matmul %234, %11, %cst_56 {dimension_numbers = #tpu.dot_dimension_numbers<[1], [0], [0], [1], [0, 0, 1, 1], [], []>} : vector<8x128xf32>, vector<128x512xf32>, vector<8x512xf32> -> vector<8x512xf32>
    %241 = arith.addf %239, %240 : vector<8x512xf32>
    %242 = vector.extract_strided_slice %241 {offsets = [0, 0], sizes = [8, 128], strides = [1, 1]} : vector<8x512xf32> to vector<8x128xf32>
    %243 = arith.negf %242 : vector<8x128xf32>
    %244 = math.exp %243 : vector<8x128xf32>
    %cst_57 = arith.constant 1.000000e+00 : f32
    %245 = vector.broadcast %cst_57 : f32 to vector<8x128xf32>
    %246 = arith.addf %245, %244 : vector<8x128xf32>
    %247 = arith.divf %245, %246 : vector<8x128xf32>
    %248 = vector.extract_strided_slice %241 {offsets = [0, 128], sizes = [8, 128], strides = [1, 1]} : vector<8x512xf32> to vector<8x128xf32>
    %249 = arith.negf %248 : vector<8x128xf32>
    %250 = math.exp %249 : vector<8x128xf32>
    %cst_58 = arith.constant 1.000000e+00 : f32
    %251 = vector.broadcast %cst_58 : f32 to vector<8x128xf32>
    %252 = arith.addf %251, %250 : vector<8x128xf32>
    %253 = arith.divf %251, %252 : vector<8x128xf32>
    %254 = vector.extract_strided_slice %241 {offsets = [0, 256], sizes = [8, 128], strides = [1, 1]} : vector<8x512xf32> to vector<8x128xf32>
    %255 = math.tanh %254 : vector<8x128xf32>
    %256 = vector.extract_strided_slice %241 {offsets = [0, 384], sizes = [8, 128], strides = [1, 1]} : vector<8x512xf32> to vector<8x128xf32>
    %257 = arith.negf %256 : vector<8x128xf32>
    %258 = math.exp %257 : vector<8x128xf32>
    %cst_59 = arith.constant 1.000000e+00 : f32
    %259 = vector.broadcast %cst_59 : f32 to vector<8x128xf32>
    %260 = arith.addf %259, %258 : vector<8x128xf32>
    %261 = arith.divf %259, %260 : vector<8x128xf32>
    %262 = arith.mulf %253, %232 : vector<8x128xf32>
    %263 = arith.mulf %247, %255 : vector<8x128xf32>
    %264 = arith.addf %262, %263 : vector<8x128xf32>
    %265 = math.tanh %264 : vector<8x128xf32>
    %266 = arith.mulf %261, %265 : vector<8x128xf32>
    %c7 = arith.constant 7 : index
    %c0_60 = arith.constant 0 : index
    %c0_61 = arith.constant 0 : index
    %267 = vector.load %arg5[%c7, %c0_60, %c0_61] : memref<8x8x128xf32, #tpu.memory_space<vmem>>, vector<1x8x128xf32>
    %268 = vector.shape_cast %267 : vector<1x8x128xf32> to vector<8x128xf32>
    %269 = vector.shape_cast %266 : vector<8x128xf32> to vector<1x8x128xf32>
    tpu.vector_store %arg5[%c7, %c0_60, %c0_61], %269 {strides = array<i32>} : memref<8x8x128xf32, #tpu.memory_space<vmem>>, vector<1x8x128xf32>,
    %c0_62 = arith.constant 0 : index
    %c0_63 = arith.constant 0 : index
    %270 = vector.load %arg6[%c0_62, %c0_63] : memref<8x128xf32, #tpu.memory_space<vmem>>, vector<8x128xf32>
    tpu.vector_store %arg6[%c0_62, %c0_63], %266 {strides = array<i32>} : memref<8x128xf32, #tpu.memory_space<vmem>>, vector<8x128xf32>,
    %c0_64 = arith.constant 0 : index
    %c0_65 = arith.constant 0 : index
    %271 = vector.load %arg7[%c0_64, %c0_65] : memref<8x128xf32, #tpu.memory_space<vmem>>, vector<8x128xf32>
    tpu.vector_store %arg7[%c0_64, %c0_65], %264 {strides = array<i32>} : memref<8x128xf32, #tpu.memory_space<vmem>>, vector<8x128xf32>,
    return
  }
  func.func @transform_0(%arg0: i32) -> (i32, i32, i32) {
    %c0_i32 = arith.constant 0 : i32
    %c0_i32_0 = arith.constant 0 : i32
    %c0_i32_1 = arith.constant 0 : i32
    return %arg0, %c0_i32, %c0_i32_0 : i32, i32, i32
  }
  func.func @transform_1(%arg0: i32) -> (i32, i32) {
    %c0_i32 = arith.constant 0 : i32
    %c0_i32_0 = arith.constant 0 : i32
    %c0_i32_1 = arith.constant 0 : i32
    return %c0_i32, %c0_i32_0 : i32, i32
  }
  func.func @transform_2(%arg0: i32) -> (i32, i32) {
    %c0_i32 = arith.constant 0 : i32
    %c0_i32_0 = arith.constant 0 : i32
    %c0_i32_1 = arith.constant 0 : i32
    return %c0_i32, %c0_i32_0 : i32, i32
  }
  func.func @transform_3(%arg0: i32) -> (i32, i32) {
    %c0_i32 = arith.constant 0 : i32
    %c0_i32_0 = arith.constant 0 : i32
    %c0_i32_1 = arith.constant 0 : i32
    return %c0_i32, %c0_i32_0 : i32, i32
  }
  func.func @transform_4(%arg0: i32) -> (i32, i32, i32) {
    %c0_i32 = arith.constant 0 : i32
    %c0_i32_0 = arith.constant 0 : i32
    %c0_i32_1 = arith.constant 0 : i32
    return %arg0, %c0_i32, %c0_i32_0 : i32, i32, i32
  }
}

</mosaic_0001>

<llo_original>
// kernel: tpu_custom_call.1
$region0: #{tpu_custom_call.1}
  #allocation0 [shape = 'u32[]', space=smem, size = 0x4, offset = 0x4, fixed_abs, tag = 'smem constant byte address 0x4 - core index']
  #allocation1 [shape = 'u32[144,128]{1,0:T(1,128)}', space=vmem, size = 0x12000, scoped, tag = 'internal scratch']
  #allocation2 [shape = 'f32[8,128]{1,0:T(8,128)}', space=vmem, size = 0x1000, scoped, tag = 'scratch operand']
  #allocation3 [shape = 'f32[8,128]{1,0:T(8,128)}', space=vmem, size = 0x1000, scoped, tag = 'scratch operand']
  %s0 = inlined_call_operand.hbm [shape: f32[8,8,16], index: 0, kind: input, shape index: {}]
  %s1 = inlined_call_operand.hbm [shape: f32[16,512], index: 1, kind: input, shape index: {}]
  %s2 = inlined_call_operand.hbm [shape: f32[128,512], index: 2, kind: input, shape index: {}]
  %s3 = inlined_call_operand.vmem [shape: f32[1,512], index: 3, kind: input, shape index: {}]
  %s4 = inlined_call_operand.hbm [shape: f32[8,8,128], index: 4, kind: output, shape index: {}]
  %s5 = sld [smem:[#allocation0]]
  $region42: #{tpu_custom_call.1} parent=0
    _
  %s7 = ssub.s32 1, %s5
  %s8 = scalar_select 0, %s7, %s5
  $region1: #{tpu_custom_call.1} parent=0
    #allocation4 [shape = 'u8[32768]{0}', space=vmem, size = 0x8000, scoped, tag = 'input window, operand 0, single buffered']
    #allocation5 [shape = 's32[1]{0}', space=sflag, size = 0x4, scoped, tag = 'scoped memory for tpu_custom_call.1']
    #allocation6 [shape = 's32[1]{0}', space=sflag, size = 0x4, scoped, tag = 'scoped memory for tpu_custom_call.1']
    #allocation7 [shape = 'u8[32768]{0}', space=vmem, size = 0x8000, scoped, tag = 'input window, operand 1, single buffered']
    #allocation8 [shape = 's32[1]{0}', space=sflag, size = 0x4, scoped, tag = 'scoped memory for tpu_custom_call.1']
    #allocation9 [shape = 'u8[262144]{0}', space=vmem, size = 0x40000, scoped, tag = 'input window, operand 2, single buffered']
    #allocation10 [shape = 'u8[32768]{0}', space=vmem, size = 0x8000, scoped, tag = 'output window, operand 0, single buffered']
    %9 = vsyncpa [#allocation5], 0
    %10 = vsyncpa [#allocation8], 0
    %11 = vsyncpa [#allocation6], 0
    // Predicated region
    $region2: #{tpu_custom_call.1} parent=1 // pred_check
      _
    $region3: #{tpu_custom_call.1} parent=1 // pred_check_branch
      %13 = sbr.rel (0) target = $region5
    $region4: #{tpu_custom_call.1} parent=1 // pred_region
      %s15 = ssub.s32 1024, 1024
      %16 = vsyncadd [#allocation5], %s15
      %s17 = sshll.u32 [#allocation4], 4
      %s18 = int_to_ptr.vmem [resolvable:$true] %s17
      %23 = dma.hbm_to_vmem [thread:$0]  %s0, 1024, %s18, [#allocation5], 128, 128, 8
    $region5: #{tpu_custom_call.1} parent=1 // pred_fallthru
      _
    // Predicated region
    $region6: #{tpu_custom_call.1} parent=1 // pred_check
      _
    $region7: #{tpu_custom_call.1} parent=1 // pred_check_branch
      %25 = sbr.rel (0) target = $region9
    $region8: #{tpu_custom_call.1} parent=1 // pred_region
      %s27 = ssub.s32 1024, 1024
      %28 = vsyncadd [#allocation8], %s27
      %s29 = sshll.u32 [#allocation7], 4
      %s30 = int_to_ptr.vmem [resolvable:$true] %s29
      %35 = dma.hbm_to_vmem [thread:$0]  %s1, 1024, %s30, [#allocation8], 512, 512, 32
    $region9: #{tpu_custom_call.1} parent=1 // pred_fallthru
      _
    // Predicated region
    $region10: #{tpu_custom_call.1} parent=1 // pred_check
      _
    $region11: #{tpu_custom_call.1} parent=1 // pred_check_branch
      %37 = sbr.rel (0) target = $region13
    $region12: #{tpu_custom_call.1} parent=1 // pred_region
      %s39 = ssub.s32 8192, 8192
      %40 = vsyncadd [#allocation8], %s39
      %s41 = sshll.u32 [#allocation9], 4
      %s42 = int_to_ptr.vmem [resolvable:$true] %s41
      %47 = dma.hbm_to_vmem [thread:$0]  %s2, 8192, %s42, [#allocation8], 512, 512, 32
    $region13: #{tpu_custom_call.1} parent=1 // pred_fallthru
      _
    // Predicated region
    $region14: #{tpu_custom_call.1} parent=1 // pred_check
      _
    $region15: #{tpu_custom_call.1} parent=1 // pred_check_branch
      %49 = sbr.rel (0) target = $region17
    $region16: #{tpu_custom_call.1} parent=1 // pred_region
      _
    $region17: #{tpu_custom_call.1} parent=1 // pred_fallthru
      _
    // Predicated region
    $region18: #{tpu_custom_call.1} parent=1 // pred_check
      _
    $region19: #{tpu_custom_call.1} parent=1 // pred_check_branch
      %51 = sbr.rel (0) target = $region21
    $region20: #{tpu_custom_call.1} parent=1 // pred_region
      %52 = dma.done [#allocation5], 1024
    $region21: #{tpu_custom_call.1} parent=1 // pred_fallthru
      _
    // Predicated region
    $region22: #{tpu_custom_call.1} parent=1 // pred_check
      _
    $region23: #{tpu_custom_call.1} parent=1 // pred_check_branch
      %54 = sbr.rel (0) target = $region25
    $region24: #{tpu_custom_call.1} parent=1 // pred_region
      %55 = dma.done [#allocation8], 1024
    $region25: #{tpu_custom_call.1} parent=1 // pred_fallthru
      _
    // Predicated region
    $region26: #{tpu_custom_call.1} parent=1 // pred_check
      _
    $region27: #{tpu_custom_call.1} parent=1 // pred_check_branch
      %57 = sbr.rel (0) target = $region29
    $region28: #{tpu_custom_call.1} parent=1 // pred_region
      %58 = dma.done [#allocation8], 8192
    $region29: #{tpu_custom_call.1} parent=1 // pred_fallthru
      _
    %p59 = scmp.eq.s32.totalorder 0, 0
    // Predicated region
    $region30: #{tpu_custom_call.1} parent=1 // pred_check
      %p60 = pneg %p59
    $region31: #{tpu_custom_call.1} parent=1 // pred_check_branch
      %62 = sbr.rel (%p60) target = $region33
    $region32: #{tpu_custom_call.1} parent=1 // pred_region
      %63 = vst [vmem:[#allocation2] sm:$0xff] 0.0
      %64 = vst [vmem:[#allocation3] sm:$0xff] 0.0
    $region33: #{tpu_custom_call.1} parent=1 // pred_fallthru
      _
    %v65 = vld [vmem:[#allocation4] sm:$0xff]
    %v66 = vld [vmem:[#allocation4 + $0x8] sm:$0xff]
    %v67 = vld [vmem:[#allocation4 + $0x10] sm:$0xff]
    %v68 = vld [vmem:[#allocation4 + $0x18] sm:$0xff]
    %v69 = vld [vmem:[#allocation4 + $0x20] sm:$0xff]
    %v70 = vld [vmem:[#allocation4 + $0x28] sm:$0xff]
    %v71 = vld [vmem:[#allocation4 + $0x30] sm:$0xff]
    %v72 = vld [vmem:[#allocation4 + $0x38] sm:$0xff]
    %v73 = vld [vmem:[#allocation7] sm:$0xff]
    %v74 = vld [vmem:[#allocation7 + $0x8] sm:$0xff]
    %v75 = vld [vmem:[#allocation7 + $0x10] sm:$0xff]
    %v76 = vld [vmem:[#allocation7 + $0x18] sm:$0xff]
    %v77 = vld [vmem:[#allocation7 + $0x20] sm:$0xff]
    %v78 = vld [vmem:[#allocation7 + $0x28] sm:$0xff]
    %v79 = vld [vmem:[#allocation7 + $0x30] sm:$0xff]
    %v80 = vld [vmem:[#allocation7 + $0x38] sm:$0xff]
    %v81 = vld [vmem:[%s3] sm:$0xf]
    %v83 = vlaneseq
    %v84 = vshrl.u32 %v83, 7
    %v85 = vsub.s32 0, %v84
    %v86 = vrot.slane %v81, %v85
    %v87 = vlaneseq
    %v88 = vshrl.u32 %v87, 7
    %v89 = vsub.s32 1, %v88
    %v90 = vrot.slane %v81, %v89
    %v91 = vlaneseq
    %v92 = vshrl.u32 %v91, 7
    %v93 = vsub.s32 2, %v92
    %v94 = vrot.slane %v81, %v93
    %v95 = vlaneseq
    %v96 = vshrl.u32 %v95, 7
    %v97 = vsub.s32 3, %v96
    %v98 = vrot.slane %v81, %v97
    %vm103 = vcmask 130048
    %v105 = vsel %vm103, %v65, 0
    %v108 = vsel %vm103, %v66, 0
    %v111 = vsel %vm103, %v67, 0
    %v114 = vsel %vm103, %v68, 0
    %v117 = vsel %vm103, %v69, 0
    %v120 = vsel %vm103, %v70, 0
    %v123 = vsel %vm103, %v71, 0
    %v126 = vsel %vm103, %v72, 0
    %128 = vmatprep.subr.mxu0 %v74
    %129 = vmatpush1.msra.mxu0 %v73
    %130 = vmatprep.subr.mxu0 %v78
    %131 = vmatpush1.msra.mxu0 %v77
    %132 = vmatprep.subr.mxu0 0.0
    %133 = vmatpush1.msra.mxu0 0.0
    %134 = vmatprep.subr.mxu0 0.0
    %135 = vmatpush1.msra.mxu0 0.0
    %136 = vmatprep.subr.mxu0 0.0
    %137 = vmatpush1.msra.mxu0 0.0
    %138 = vmatprep.subr.mxu0 0.0
    %139 = vmatpush1.msra.mxu0 0.0
    %140 = vmatprep.subr.mxu0 0.0
    %141 = vmatpush1.msra.mxu0 0.0
    %142 = vmatprep.subr.mxu0 0.0
    %143 = vmatpush1.msra.mxu0 0.0
    %144 = vmatprep.subr.mxu0 0.0
    %145 = vmatpush1.msra.mxu0 0.0
    %146 = vmatprep.subr.mxu0 0.0
    %147 = vmatpush1.msra.mxu0 0.0
    %148 = vmatprep.subr.mxu0 0.0
    %149 = vmatpush1.msra.mxu0 0.0
    %150 = vmatprep.subr.mxu0 0.0
    %151 = vmatpush1.msra.mxu0 0.0
    %152 = vmatprep.subr.mxu0 0.0
    %153 = vmatpush1.msra.mxu0 0.0
    %154 = vmatprep.subr.mxu0 0.0
    %155 = vmatpush1.msra.mxu0 0.0
    %156 = vmatprep.subr.mxu0 0.0
    %157 = vmatpush1.msra.mxu0 0.0
    %158 = vmatprep.subr.mxu0 0.0
    %159 = vmatpush1.msra.mxu0 0.0
    %160 = vmatprep.subr.mxu0 0.0
    %161 = vmatpush1.msra.mxu0 0.0
    %162 = vmatprep.subr.mxu0 0.0
    %163 = vmatpush1.msra.mxu0 0.0
    %164 = vmatprep.subr.mxu0 0.0
    %165 = vmatpush1.msra.mxu0 0.0
    %166 = vmatprep.subr.mxu0 0.0
    %167 = vmatpush1.msra.mxu0 0.0
    %168 = vmatprep.subr.mxu0 0.0
    %169 = vmatpush1.msra.mxu0 0.0
    %170 = vmatprep.subr.mxu0 0.0
    %171 = vmatpush1.msra.mxu0 0.0
    %172 = vmatprep.subr.mxu0 0.0
    %173 = vmatpush1.msra.mxu0 0.0
    %174 = vmatprep.subr.mxu0 0.0
    %175 = vmatpush1.msra.mxu0 0.0
    %176 = vmatprep.subr.mxu0 0.0
    %177 = vmatpush1.msra.mxu0 0.0
    %178 = vmatprep.subr.mxu0 0.0
    %179 = vmatpush1.msra.mxu0 0.0
    %180 = vmatprep.subr.mxu0 0.0
    %181 = vmatpush1.msra.mxu0 0.0
    %182 = vmatprep.subr.mxu0 0.0
    %183 = vmatpush1.msra.mxu0 0.0
    %184 = vmatprep.subr.mxu0 0.0
    %185 = vmatpush1.msra.mxu0 0.0
    %186 = vmatprep.subr.mxu0 0.0
    %187 = vmatpush1.msra.mxu0 0.0
    %188 = vmatprep.subr.mxu0 0.0
    %189 = vmatpush1.msra.mxu0 0.0
    %190 = vmatprep.subr.mxu0 0.0
    %191 = vmatpush1.msra.mxu0 0.0
    %192 = vmatprep.mubr.f32.mxu0 0.0
    %193 = vmatmul.mubr.f32.gmra.mrb[0].mxu0 %v105
    %v194 = vpop.f32.mrb[0].mxu0
    %v195 = vadd.f32 %v86, %v194
    %v196 = vpop.f32.mrb[0].mxu0
    %v197 = vadd.f32 %v90, %v196
    %198 = vmatprep.mubr.f32.mxu0 0.0
    %199 = vmatmul.mubr.f32.gmra.mrb[0].mxu0 %v108
    %v200 = vpop.f32.mrb[0].mxu0
    %v201 = vadd.f32 %v86, %v200
    %v202 = vpop.f32.mrb[0].mxu0
    %v203 = vadd.f32 %v90, %v202
    %204 = vmatprep.mubr.f32.mxu0 0.0
    %205 = vmatmul.mubr.f32.gmra.mrb[0].mxu0 %v111
    %v206 = vpop.f32.mrb[0].mxu0
    %v207 = vadd.f32 %v86, %v206
    %v208 = vpop.f32.mrb[0].mxu0
    %v209 = vadd.f32 %v90, %v208
    %210 = vmatprep.mubr.f32.mxu0 0.0
    %211 = vmatmul.mubr.f32.gmra.mrb[0].mxu0 %v114
    %v212 = vpop.f32.mrb[0].mxu0
    %v213 = vadd.f32 %v86, %v212
    %v214 = vpop.f32.mrb[0].mxu0
    %v215 = vadd.f32 %v90, %v214
    %216 = vmatprep.mubr.f32.mxu0 0.0
    %217 = vmatmul.mubr.f32.gmra.mrb[0].mxu0 %v117
    %v218 = vpop.f32.mrb[0].mxu0
    %v219 = vadd.f32 %v86, %v218
    %v220 = vpop.f32.mrb[0].mxu0
    %v221 = vadd.f32 %v90, %v220
    %222 = vmatprep.mubr.f32.mxu0 0.0
    %223 = vmatmul.mubr.f32.gmra.mrb[0].mxu0 %v120
    %v224 = vpop.f32.mrb[0].mxu0
    %v225 = vadd.f32 %v86, %v224
    %v226 = vpop.f32.mrb[0].mxu0
    %v227 = vadd.f32 %v90, %v226
    %228 = vmatprep.mubr.f32.mxu0 0.0
    %229 = vmatmul.mubr.f32.gmra.mrb[0].mxu0 %v123
    %v230 = vpop.f32.mrb[0].mxu0
    %v231 = vadd.f32 %v86, %v230
    %v232 = vpop.f32.mrb[0].mxu0
    %v233 = vadd.f32 %v90, %v232
    %234 = vmatprep.mubr.f32.mxu0 0.0
    %235 = vmatmul.mubr.f32.gmra.mrb[0].mxu0 %v126
    %v236 = vpop.f32.mrb[0].mxu0
    %v237 = vadd.f32 %v86, %v236
    %v238 = vpop.f32.mrb[0].mxu0
    %v239 = vadd.f32 %v90, %v238
    %240 = vdwg.mxu0
    %241 = vmatprep.subr.mxu0 %v76
    %242 = vmatpush1.msra.mxu0 %v75
    %243 = vmatprep.subr.mxu0 %v80
    %244 = vmatpush1.msra.mxu0 %v79
    %245 = vmatprep.subr.mxu0 0.0
    %246 = vmatpush1.msra.mxu0 0.0
    %247 = vmatprep.subr.mxu0 0.0
    %248 = vmatpush1.msra.mxu0 0.0
    %249 = vmatprep.subr.mxu0 0.0
    %250 = vmatpush1.msra.mxu0 0.0
    %251 = vmatprep.subr.mxu0 0.0
    %252 = vmatpush1.msra.mxu0 0.0
    %253 = vmatprep.subr.mxu0 0.0
    %254 = vmatpush1.msra.mxu0 0.0
    %255 = vmatprep.subr.mxu0 0.0
    %256 = vmatpush1.msra.mxu0 0.0
    %257 = vmatprep.subr.mxu0 0.0
    %258 = vmatpush1.msra.mxu0 0.0
    %259 = vmatprep.subr.mxu0 0.0
    %260 = vmatpush1.msra.mxu0 0.0
    %261 = vmatprep.subr.mxu0 0.0
    %262 = vmatpush1.msra.mxu0 0.0
    %263 = vmatprep.subr.mxu0 0.0
    %264 = vmatpush1.msra.mxu0 0.0
    %265 = vmatprep.subr.mxu0 0.0
    %266 = vmatpush1.msra.mxu0 0.0
    %267 = vmatprep.subr.mxu0 0.0
    %268 = vmatpush1.msra.mxu0 0.0
    %269 = vmatprep.subr.mxu0 0.0
    %270 = vmatpush1.msra.mxu0 0.0
    %271 = vmatprep.subr.mxu0 0.0
    %272 = vmatpush1.msra.mxu0 0.0
    %273 = vmatprep.subr.mxu0 0.0
    %274 = vmatpush1.msra.mxu0 0.0
    %275 = vmatprep.subr.mxu0 0.0
    %276 = vmatpush1.msra.mxu0 0.0
    %277 = vmatprep.subr.mxu0 0.0
    %278 = vmatpush1.msra.mxu0 0.0
    %279 = vmatprep.subr.mxu0 0.0
    %280 = vmatpush1.msra.mxu0 0.0
    %281 = vmatprep.subr.mxu0 0.0
    %282 = vmatpush1.msra.mxu0 0.0
    %283 = vmatprep.subr.mxu0 0.0
    %284 = vmatpush1.msra.mxu0 0.0
    %285 = vmatprep.subr.mxu0 0.0
    %286 = vmatpush1.msra.mxu0 0.0
    %287 = vmatprep.subr.mxu0 0.0
    %288 = vmatpush1.msra.mxu0 0.0
    %289 = vmatprep.subr.mxu0 0.0
    %290 = vmatpush1.msra.mxu0 0.0
    %291 = vmatprep.subr.mxu0 0.0
    %292 = vmatpush1.msra.mxu0 0.0
    %293 = vmatprep.subr.mxu0 0.0
    %294 = vmatpush1.msra.mxu0 0.0
    %295 = vmatprep.subr.mxu0 0.0
    %296 = vmatpush1.msra.mxu0 0.0
    %297 = vmatprep.subr.mxu0 0.0
    %298 = vmatpush1.msra.mxu0 0.0
    %299 = vmatprep.subr.mxu0 0.0
    %300 = vmatpush1.msra.mxu0 0.0
    %301 = vmatprep.subr.mxu0 0.0
    %302 = vmatpush1.msra.mxu0 0.0
    %303 = vmatprep.subr.mxu0 0.0
    %304 = vmatpush1.msra.mxu0 0.0
    %305 = vmatprep.mubr.f32.mxu0 0.0
    %306 = vmatmul.mubr.f32.gmra.mrb[0].mxu0 %v105
    %v307 = vpop.f32.mrb[0].mxu0
    %v308 = vadd.f32 %v94, %v307
    %v309 = vpop.f32.mrb[0].mxu0
    %v310 = vadd.f32 %v98, %v309
    %311 = vmatprep.mubr.f32.mxu0 0.0
    %312 = vmatmul.mubr.f32.gmra.mrb[0].mxu0 %v108
    %v313 = vpop.f32.mrb[0].mxu0
    %v314 = vadd.f32 %v94, %v313
    %v315 = vpop.f32.mrb[0].mxu0
    %v316 = vadd.f32 %v98, %v315
    %317 = vmatprep.mubr.f32.mxu0 0.0
    %318 = vmatmul.mubr.f32.gmra.mrb[0].mxu0 %v111
    %v319 = vpop.f32.mrb[0].mxu0
    %v320 = vadd.f32 %v94, %v319
    %v321 = vpop.f32.mrb[0].mxu0
    %v322 = vadd.f32 %v98, %v321
    %323 = vmatprep.mubr.f32.mxu0 0.0
    %324 = vmatmul.mubr.f32.gmra.mrb[0].mxu0 %v114
    %v325 = vpop.f32.mrb[0].mxu0
    %v326 = vadd.f32 %v94, %v325
    %v327 = vpop.f32.mrb[0].mxu0
    %v328 = vadd.f32 %v98, %v327
    %329 = vmatprep.mubr.f32.mxu0 0.0
    %330 = vmatmul.mubr.f32.gmra.mrb[0].mxu0 %v117
    %v331 = vpop.f32.mrb[0].mxu0
    %v332 = vadd.f32 %v94, %v331
    %v333 = vpop.f32.mrb[0].mxu0
    %v334 = vadd.f32 %v98, %v333
    %335 = vmatprep.mubr.f32.mxu0 0.0
    %336 = vmatmul.mubr.f32.gmra.mrb[0].mxu0 %v120
    %v337 = vpop.f32.mrb[0].mxu0
    %v338 = vadd.f32 %v94, %v337
    %v339 = vpop.f32.mrb[0].mxu0
    %v340 = vadd.f32 %v98, %v339
    %341 = vmatprep.mubr.f32.mxu0 0.0
    %342 = vmatmul.mubr.f32.gmra.mrb[0].mxu0 %v123
    %v343 = vpop.f32.mrb[0].mxu0
    %v344 = vadd.f32 %v94, %v343
    %v345 = vpop.f32.mrb[0].mxu0
    %v346 = vadd.f32 %v98, %v345
    %347 = vmatprep.mubr.f32.mxu0 0.0
    %348 = vmatmul.mubr.f32.gmra.mrb[0].mxu0 %v126
    %v349 = vpop.f32.mrb[0].mxu0
    %v350 = vadd.f32 %v94, %v349
    %v351 = vpop.f32.mrb[0].mxu0
    %v352 = vadd.f32 %v98, %v351
    %353 = vdwg.mxu0
    %v354 = vld [vmem:[#allocation9] sm:$0xff]
    %v355 = vld [vmem:[#allocation9 + $0x8] sm:$0xff]
    %v356 = vld [vmem:[#allocation9 + $0x10] sm:$0xff]
    %v357 = vld [vmem:[#allocation9 + $0x18] sm:$0xff]
    %v358 = vld [vmem:[#allocation9 + $0x20] sm:$0xff]
    %v359 = vld [vmem:[#allocation9 + $0x28] sm:$0xff]
    %v360 = vld [vmem:[#allocation9 + $0x30] sm:$0xff]
    %v361 = vld [vmem:[#allocation9 + $0x38] sm:$0xff]
    %v362 = vld [vmem:[#allocation9 + $0x40] sm:$0xff]
    %v363 = vld [vmem:[#allocation9 + $0x48] sm:$0xff]
    %v364 = vld [vmem:[#allocation9 + $0x50] sm:$0xff]
    %v365 = vld [vmem:[#allocation9 + $0x58] sm:$0xff]
    %v366 = vld [vmem:[#allocation9 + $0x60] sm:$0xff]
    %v367 = vld [vmem:[#allocation9 + $0x68] sm:$0xff]
    %v368 = vld [vmem:[#allocation9 + $0x70] sm:$0xff]
    %v369 = vld [vmem:[#allocation9 + $0x78] sm:$0xff]
    %v370 = vld [vmem:[#allocation9 + $0x80] sm:$0xff]
    %v371 = vld [vmem:[#allocation9 + $0x88] sm:$0xff]
    %v372 = vld [vmem:[#allocation9 + $0x90] sm:$0xff]
    %v373 = vld [vmem:[#allocation9 + $0x98] sm:$0xff]
    %v374 = vld [vmem:[#allocation9 + $0xa0] sm:$0xff]
    %v375 = vld [vmem:[#allocation9 + $0xa8] sm:$0xff]
    %v376 = vld [vmem:[#allocation9 + $0xb0] sm:$0xff]
    %v377 = vld [vmem:[#allocation9 + $0xb8] sm:$0xff]
    %v378 = vld [vmem:[#allocation9 + $0xc0] sm:$0xff]
    %v379 = vld [vmem:[#allocation9 + $0xc8] sm:$0xff]
    %v380 = vld [vmem:[#allocation9 + $0xd0] sm:$0xff]
    %v381 = vld [vmem:[#allocation9 + $0xd8] sm:$0xff]
    %v382 = vld [vmem:[#allocation9 + $0xe0] sm:$0xff]
    %v383 = vld [vmem:[#allocation9 + $0xe8] sm:$0xff]
    %v384 = vld [vmem:[#allocation9 + $0xf0] sm:$0xff]
    %v385 = vld [vmem:[#allocation9 + $0xf8] sm:$0xff]
    %v386 = vld [vmem:[#allocation9 + $0x100] sm:$0xff]
    %v387 = vld [vmem:[#allocation9 + $0x108] sm:$0xff]
    %v388 = vld [vmem:[#allocation9 + $0x110] sm:$0xff]
    %v389 = vld [vmem:[#allocation9 + $0x118] sm:$0xff]
    %v390 = vld [vmem:[#allocation9 + $0x120] sm:$0xff]
    %v391 = vld [vmem:[#allocation9 + $0x128] sm:$0xff]
    %v392 = vld [vmem:[#allocation9 + $0x130] sm:$0xff]
    %v393 = vld [vmem:[#allocation9 + $0x138] sm:$0xff]
    %v394 = vld [vmem:[#allocation9 + $0x140] sm:$0xff]
    %v395 = vld [vmem:[#allocation9 + $0x148] sm:$0xff]
    %v396 = vld [vmem:[#allocation9 + $0x150] sm:$0xff]
    %v397 = vld [vmem:[#allocation9 + $0x158] sm:$0xff]
    %v398 = vld [vmem:[#allocation9 + $0x160] sm:$0xff]
    %v399 = vld [vmem:[#allocation9 + $0x168] sm:$0xff]
    %v400 = vld [vmem:[#allocation9 + $0x170] sm:$0xff]
    %v401 = vld [vmem:[#allocation9 + $0x178] sm:$0xff]
    %v402 = vld [vmem:[#allocation9 + $0x180] sm:$0xff]
    %v403 = vld [vmem:[#allocation9 + $0x188] sm:$0xff]
    %v404 = vld [vmem:[#allocation9 + $0x190] sm:$0xff]
    %v405 = vld [vmem:[#allocation9 + $0x198] sm:$0xff]
    %v406 = vld [vmem:[#allocation9 + $0x1a0] sm:$0xff]
    %v407 = vld [vmem:[#allocation9 + $0x1a8] sm:$0xff]
    %v408 = vld [vmem:[#allocation9 + $0x1b0] sm:$0xff]
    %v409 = vld [vmem:[#allocation9 + $0x1b8] sm:$0xff]
    %v410 = vld [vmem:[#allocation9 + $0x1c0] sm:$0xff]
    %v411 = vld [vmem:[#allocation9 + $0x1c8] sm:$0xff]
    %v412 = vld [vmem:[#allocation9 + $0x1d0] sm:$0xff]
    %v413 = vld [vmem:[#allocation9 + $0x1d8] sm:$0xff]
    %v414 = vld [vmem:[#allocation9 + $0x1e0] sm:$0xff]
    %v415 = vld [vmem:[#allocation9 + $0x1e8] sm:$0xff]
    %v416 = vld [vmem:[#allocation9 + $0x1f0] sm:$0xff]
    %v417 = vld [vmem:[#allocation9 + $0x1f8] sm:$0xff]
    %v418 = vld [vmem:[#allocation2] sm:$0xff]
    %v419 = vld [vmem:[#allocation3] sm:$0xff]
    %420 = vmatprep.subr.mxu0 %v355
    %421 = vmatpush1.msra.mxu0 %v354
    %422 = vmatprep.subr.mxu0 %v359
    %423 = vmatpush1.msra.mxu0 %v358
    %424 = vmatprep.subr.mxu0 %v363
    %425 = vmatpush1.msra.mxu0 %v362
    %426 = vmatprep.subr.mxu0 %v367
    %427 = vmatpush1.msra.mxu0 %v366
    %428 = vmatprep.subr.mxu0 %v371
    %429 = vmatpush1.msra.mxu0 %v370
    %430 = vmatprep.subr.mxu0 %v375
    %431 = vmatpush1.msra.mxu0 %v374
    %432 = vmatprep.subr.mxu0 %v379
    %433 = vmatpush1.msra.mxu0 %v378
    %434 = vmatprep.subr.mxu0 %v383
    %435 = vmatpush1.msra.mxu0 %v382
    %436 = vmatprep.subr.mxu0 %v387
    %437 = vmatpush1.msra.mxu0 %v386
    %438 = vmatprep.subr.mxu0 %v391
    %439 = vmatpush1.msra.mxu0 %v390
    %440 = vmatprep.subr.mxu0 %v395
    %441 = vmatpush1.msra.mxu0 %v394
    %442 = vmatprep.subr.mxu0 %v399
    %443 = vmatpush1.msra.mxu0 %v398
    %444 = vmatprep.subr.mxu0 %v403
    %445 = vmatpush1.msra.mxu0 %v402
    %446 = vmatprep.subr.mxu0 %v407
    %447 = vmatpush1.msra.mxu0 %v406
    %448 = vmatprep.subr.mxu0 %v411
    %449 = vmatpush1.msra.mxu0 %v410
    %450 = vmatprep.subr.mxu0 %v415
    %451 = vmatpush1.msra.mxu0 %v414
    %452 = vmatprep.subr.mxu0 0.0
    %453 = vmatpush1.msra.mxu0 0.0
    %454 = vmatprep.subr.mxu0 0.0
    %455 = vmatpush1.msra.mxu0 0.0
    %456 = vmatprep.subr.mxu0 0.0
    %457 = vmatpush1.msra.mxu0 0.0
    %458 = vmatprep.subr.mxu0 0.0
    %459 = vmatpush1.msra.mxu0 0.0
    %460 = vmatprep.subr.mxu0 0.0
    %461 = vmatpush1.msra.mxu0 0.0
    %462 = vmatprep.subr.mxu0 0.0
    %463 = vmatpush1.msra.mxu0 0.0
    %464 = vmatprep.subr.mxu0 0.0
    %465 = vmatpush1.msra.mxu0 0.0
    %466 = vmatprep.subr.mxu0 0.0
    %467 = vmatpush1.msra.mxu0 0.0
    %468 = vmatprep.subr.mxu0 0.0
    %469 = vmatpush1.msra.mxu0 0.0
    %470 = vmatprep.subr.mxu0 0.0
    %471 = vmatpush1.msra.mxu0 0.0
    %472 = vmatprep.subr.mxu0 0.0
    %473 = vmatpush1.msra.mxu0 0.0
    %474 = vmatprep.subr.mxu0 0.0
    %475 = vmatpush1.msra.mxu0 0.0
    %476 = vmatprep.subr.mxu0 0.0
    %477 = vmatpush1.msra.mxu0 0.0
    %478 = vmatprep.subr.mxu0 0.0
    %479 = vmatpush1.msra.mxu0 0.0
    %480 = vmatprep.subr.mxu0 0.0
    %481 = vmatpush1.msra.mxu0 0.0
    %482 = vmatprep.subr.mxu0 0.0
    %483 = vmatpush1.msra.mxu0 0.0
    %484 = vmatprep.mubr.f32.mxu0 0.0
    %485 = vmatmul.mubr.f32.gmra.mrb[0].mxu0 %v418
    %v486 = vpop.f32.mrb[0].mxu0
    %v487 = vadd.f32 0.0, %v486
    %v488 = vpop.f32.mrb[0].mxu0
    %v489 = vadd.f32 0.0, %v488
    %490 = vdwg.mxu0
    %491 = vmatprep.subr.mxu0 %v357
    %492 = vmatpush1.msra.mxu0 %v356
    %493 = vmatprep.subr.mxu0 %v361
    %494 = vmatpush1.msra.mxu0 %v360
    %495 = vmatprep.subr.mxu0 %v365
    %496 = vmatpush1.msra.mxu0 %v364
    %497 = vmatprep.subr.mxu0 %v369
    %498 = vmatpush1.msra.mxu0 %v368
    %499 = vmatprep.subr.mxu0 %v373
    %500 = vmatpush1.msra.mxu0 %v372
    %501 = vmatprep.subr.mxu0 %v377
    %502 = vmatpush1.msra.mxu0 %v376
    %503 = vmatprep.subr.mxu0 %v381
    %504 = vmatpush1.msra.mxu0 %v380
    %505 = vmatprep.subr.mxu0 %v385
    %506 = vmatpush1.msra.mxu0 %v384
    %507 = vmatprep.subr.mxu0 %v389
    %508 = vmatpush1.msra.mxu0 %v388
    %509 = vmatprep.subr.mxu0 %v393
    %510 = vmatpush1.msra.mxu0 %v392
    %511 = vmatprep.subr.mxu0 %v397
    %512 = vmatpush1.msra.mxu0 %v396
    %513 = vmatprep.subr.mxu0 %v401
    %514 = vmatpush1.msra.mxu0 %v400
    %515 = vmatprep.subr.mxu0 %v405
    %516 = vmatpush1.msra.mxu0 %v404
    %517 = vmatprep.subr.mxu0 %v409
    %518 = vmatpush1.msra.mxu0 %v408
    %519 = vmatprep.subr.mxu0 %v413
    %520 = vmatpush1.msra.mxu0 %v412
    %521 = vmatprep.subr.mxu0 %v417
    %522 = vmatpush1.msra.mxu0 %v416
    %523 = vmatprep.subr.mxu0 0.0
    %524 = vmatpush1.msra.mxu0 0.0
    %525 = vmatprep.subr.mxu0 0.0
    %526 = vmatpush1.msra.mxu0 0.0
    %527 = vmatprep.subr.mxu0 0.0
    %528 = vmatpush1.msra.mxu0 0.0
    %529 = vmatprep.subr.mxu0 0.0
    %530 = vmatpush1.msra.mxu0 0.0
    %531 = vmatprep.subr.mxu0 0.0
    %532 = vmatpush1.msra.mxu0 0.0
    %533 = vmatprep.subr.mxu0 0.0
    %534 = vmatpush1.msra.mxu0 0.0
    %535 = vmatprep.subr.mxu0 0.0
    %536 = vmatpush1.msra.mxu0 0.0
    %537 = vmatprep.subr.mxu0 0.0
    %538 = vmatpush1.msra.mxu0 0.0
    %539 = vmatprep.subr.mxu0 0.0
    %540 = vmatpush1.msra.mxu0 0.0
    %541 = vmatprep.subr.mxu0 0.0
    %542 = vmatpush1.msra.mxu0 0.0
    %543 = vmatprep.subr.mxu0 0.0
    %544 = vmatpush1.msra.mxu0 0.0
    %545 = vmatprep.subr.mxu0 0.0
    %546 = vmatpush1.msra.mxu0 0.0
    %547 = vmatprep.subr.mxu0 0.0
    %548 = vmatpush1.msra.mxu0 0.0
    %549 = vmatprep.subr.mxu0 0.0
    %550 = vmatpush1.msra.mxu0 0.0
    %551 = vmatprep.subr.mxu0 0.0
    %552 = vmatpush1.msra.mxu0 0.0
    %553 = vmatprep.subr.mxu0 0.0
    %554 = vmatpush1.msra.mxu0 0.0
    %555 = vmatprep.mubr.f32.mxu0 0.0
    %556 = vmatmul.mubr.f32.gmra.mrb[0].mxu0 %v418
    %v557 = vpop.f32.mrb[0].mxu0
    %v558 = vadd.f32 0.0, %v557
    %v559 = vpop.f32.mrb[0].mxu0
    %v560 = vadd.f32 0.0, %v559
    %561 = vdwg.mxu0
    %v562 = vadd.f32 %v195, %v487
    %v563 = vadd.f32 %v197, %v489
    %v564 = vadd.f32 %v308, %v558
    %v565 = vadd.f32 %v310, %v560
    %v566 = vxor.u32 %v562, 2147483648
    %v567 = vmul.f32 %v566, 1.442695
    %v568 = vpow.pop %v567
    %v569 = vadd.f32 %v568, 1.0
    %v570 = vrcp.pop %v569
    %v571 = vmul.f32 1.0, %v570
    %v572 = vxor.u32 %v563, 2147483648
    %v573 = vmul.f32 %v572, 1.442695
    %v574 = vpow.pop %v573
    %v575 = vadd.f32 %v574, 1.0
    %v576 = vrcp.pop %v575
    %v577 = vmul.f32 1.0, %v576
    %v578 = vtanh.pop %v564
    %v579 = vxor.u32 %v565, 2147483648
    %v580 = vmul.f32 %v579, 1.442695
    %v581 = vpow.pop %v580
    %v582 = vadd.f32 %v581, 1.0
    %v583 = vrcp.pop %v582
    %v584 = vmul.f32 1.0, %v583
    %v585 = vmul.f32 %v577, %v419
    %v586 = vmul.f32 %v571, %v578
    %v587 = vadd.f32 %v585, %v586
    %v588 = vtanh.pop %v587
    %v589 = vmul.f32 %v584, %v588
    %590 = vst [vmem:[#allocation10] sm:$0xff] %v589
    %591 = vmatprep.subr.mxu0 %v355
    %592 = vmatpush1.msra.mxu0 %v354
    %593 = vmatprep.subr.mxu0 %v359
    %594 = vmatpush1.msra.mxu0 %v358
    %595 = vmatprep.subr.mxu0 %v363
    %596 = vmatpush1.msra.mxu0 %v362
    %597 = vmatprep.subr.mxu0 %v367
    %598 = vmatpush1.msra.mxu0 %v366
    %599 = vmatprep.subr.mxu0 %v371
    %600 = vmatpush1.msra.mxu0 %v370
    %601 = vmatprep.subr.mxu0 %v375
    %602 = vmatpush1.msra.mxu0 %v374
    %603 = vmatprep.subr.mxu0 %v379
    %604 = vmatpush1.msra.mxu0 %v378
    %605 = vmatprep.subr.mxu0 %v383
    %606 = vmatpush1.msra.mxu0 %v382
    %607 = vmatprep.subr.mxu0 %v387
    %608 = vmatpush1.msra.mxu0 %v386
    %609 = vmatprep.subr.mxu0 %v391
    %610 = vmatpush1.msra.mxu0 %v390
    %611 = vmatprep.subr.mxu0 %v395
    %612 = vmatpush1.msra.mxu0 %v394
    %613 = vmatprep.subr.mxu0 %v399
    %614 = vmatpush1.msra.mxu0 %v398
    %615 = vmatprep.subr.mxu0 %v403
    %616 = vmatpush1.msra.mxu0 %v402
    %617 = vmatprep.subr.mxu0 %v407
    %618 = vmatpush1.msra.mxu0 %v406
    %619 = vmatprep.subr.mxu0 %v411
    %620 = vmatpush1.msra.mxu0 %v410
    %621 = vmatprep.subr.mxu0 %v415
    %622 = vmatpush1.msra.mxu0 %v414
    %623 = vmatprep.subr.mxu0 0.0
    %624 = vmatpush1.msra.mxu0 0.0
    %625 = vmatprep.subr.mxu0 0.0
    %626 = vmatpush1.msra.mxu0 0.0
    %627 = vmatprep.subr.mxu0 0.0
    %628 = vmatpush1.msra.mxu0 0.0
    %629 = vmatprep.subr.mxu0 0.0
    %630 = vmatpush1.msra.mxu0 0.0
    %631 = vmatprep.subr.mxu0 0.0
    %632 = vmatpush1.msra.mxu0 0.0
    %633 = vmatprep.subr.mxu0 0.0
    %634 = vmatpush1.msra.mxu0 0.0
    %635 = vmatprep.subr.mxu0 0.0
    %636 = vmatpush1.msra.mxu0 0.0
    %637 = vmatprep.subr.mxu0 0.0
    %638 = vmatpush1.msra.mxu0 0.0
    %639 = vmatprep.subr.mxu0 0.0
    %640 = vmatpush1.msra.mxu0 0.0
    %641 = vmatprep.subr.mxu0 0.0
    %642 = vmatpush1.msra.mxu0 0.0
    %643 = vmatprep.subr.mxu0 0.0
    %644 = vmatpush1.msra.mxu0 0.0
    %645 = vmatprep.subr.mxu0 0.0
    %646 = vmatpush1.msra.mxu0 0.0
    %647 = vmatprep.subr.mxu0 0.0
    %648 = vmatpush1.msra.mxu0 0.0
    %649 = vmatprep.subr.mxu0 0.0
    %650 = vmatpush1.msra.mxu0 0.0
    %651 = vmatprep.subr.mxu0 0.0
    %652 = vmatpush1.msra.mxu0 0.0
    %653 = vmatprep.subr.mxu0 0.0
    %654 = vmatpush1.msra.mxu0 0.0
    %655 = vmatprep.mubr.f32.mxu0 0.0
    %656 = vmatmul.mubr.f32.gmra.mrb[0].mxu0 %v589
    %v657 = vpop.f32.mrb[0].mxu0
    %v658 = vadd.f32 0.0, %v657
    %v659 = vpop.f32.mrb[0].mxu0
    %v660 = vadd.f32 0.0, %v659
    %661 = vdwg.mxu0
    %662 = vmatprep.subr.mxu0 %v357
    %663 = vmatpush1.msra.mxu0 %v356
    %664 = vmatprep.subr.mxu0 %v361
    %665 = vmatpush1.msra.mxu0 %v360
    %666 = vmatprep.subr.mxu0 %v365
    %667 = vmatpush1.msra.mxu0 %v364
    %668 = vmatprep.subr.mxu0 %v369
    %669 = vmatpush1.msra.mxu0 %v368
    %670 = vmatprep.subr.mxu0 %v373
    %671 = vmatpush1.msra.mxu0 %v372
    %672 = vmatprep.subr.mxu0 %v377
    %673 = vmatpush1.msra.mxu0 %v376
    %674 = vmatprep.subr.mxu0 %v381
    %675 = vmatpush1.msra.mxu0 %v380
    %676 = vmatprep.subr.mxu0 %v385
    %677 = vmatpush1.msra.mxu0 %v384
    %678 = vmatprep.subr.mxu0 %v389
    %679 = vmatpush1.msra.mxu0 %v388
    %680 = vmatprep.subr.mxu0 %v393
    %681 = vmatpush1.msra.mxu0 %v392
    %682 = vmatprep.subr.mxu0 %v397
    %683 = vmatpush1.msra.mxu0 %v396
    %684 = vmatprep.subr.mxu0 %v401
    %685 = vmatpush1.msra.mxu0 %v400
    %686 = vmatprep.subr.mxu0 %v405
    %687 = vmatpush1.msra.mxu0 %v404
    %688 = vmatprep.subr.mxu0 %v409
    %689 = vmatpush1.msra.mxu0 %v408
    %690 = vmatprep.subr.mxu0 %v413
    %691 = vmatpush1.msra.mxu0 %v412
    %692 = vmatprep.subr.mxu0 %v417
    %693 = vmatpush1.msra.mxu0 %v416
    %694 = vmatprep.subr.mxu0 0.0
    %695 = vmatpush1.msra.mxu0 0.0
    %696 = vmatprep.subr.mxu0 0.0
    %697 = vmatpush1.msra.mxu0 0.0
    %698 = vmatprep.subr.mxu0 0.0
    %699 = vmatpush1.msra.mxu0 0.0
    %700 = vmatprep.subr.mxu0 0.0
    %701 = vmatpush1.msra.mxu0 0.0
    %702 = vmatprep.subr.mxu0 0.0
    %703 = vmatpush1.msra.mxu0 0.0
    %704 = vmatprep.subr.mxu0 0.0
    %705 = vmatpush1.msra.mxu0 0.0
    %706 = vmatprep.subr.mxu0 0.0
    %707 = vmatpush1.msra.mxu0 0.0
    %708 = vmatprep.subr.mxu0 0.0
    %709 = vmatpush1.msra.mxu0 0.0
    %710 = vmatprep.subr.mxu0 0.0
    %711 = vmatpush1.msra.mxu0 0.0
    %712 = vmatprep.subr.mxu0 0.0
    %713 = vmatpush1.msra.mxu0 0.0
    %714 = vmatprep.subr.mxu0 0.0
    %715 = vmatpush1.msra.mxu0 0.0
    %716 = vmatprep.subr.mxu0 0.0
    %717 = vmatpush1.msra.mxu0 0.0
    %718 = vmatprep.subr.mxu0 0.0
    %719 = vmatpush1.msra.mxu0 0.0
    %720 = vmatprep.subr.mxu0 0.0
    %721 = vmatpush1.msra.mxu0 0.0
    %722 = vmatprep.subr.mxu0 0.0
    %723 = vmatpush1.msra.mxu0 0.0
    %724 = vmatprep.subr.mxu0 0.0
    %725 = vmatpush1.msra.mxu0 0.0
    %726 = vmatprep.mubr.f32.mxu0 0.0
    %727 = vmatmul.mubr.f32.gmra.mrb[0].mxu0 %v589
    %v728 = vpop.f32.mrb[0].mxu0
    %v729 = vadd.f32 0.0, %v728
    %v730 = vpop.f32.mrb[0].mxu0
    %v731 = vadd.f32 0.0, %v730
    %732 = vdwg.mxu0
    %v733 = vadd.f32 %v201, %v658
    %v734 = vadd.f32 %v203, %v660
    %v735 = vadd.f32 %v314, %v729
    %v736 = vadd.f32 %v316, %v731
    %v737 = vxor.u32 %v733, 2147483648
    %v738 = vmul.f32 %v737, 1.442695
    %v739 = vpow.pop %v738
    %v740 = vadd.f32 %v739, 1.0
    %v741 = vrcp.pop %v740
    %v742 = vmul.f32 1.0, %v741
    %v743 = vxor.u32 %v734, 2147483648
    %v744 = vmul.f32 %v743, 1.442695
    %v745 = vpow.pop %v744
    %v746 = vadd.f32 %v745, 1.0
    %v747 = vrcp.pop %v746
    %v748 = vmul.f32 1.0, %v747
    %v749 = vtanh.pop %v735
    %v750 = vxor.u32 %v736, 2147483648
    %v751 = vmul.f32 %v750, 1.442695
    %v752 = vpow.pop %v751
    %v753 = vadd.f32 %v752, 1.0
    %v754 = vrcp.pop %v753
    %v755 = vmul.f32 1.0, %v754
    %v756 = vmul.f32 %v748, %v587
    %v757 = vmul.f32 %v742, %v749
    %v758 = vadd.f32 %v756, %v757
    %v759 = vtanh.pop %v758
    %v760 = vmul.f32 %v755, %v759
    %s761 = scalar_lea.vmem [#allocation10], 8
    %762 = vst [vmem:[%s761] sm:$0xff] %v760
    %763 = vmatprep.subr.mxu0 %v355
    %764 = vmatpush1.msra.mxu0 %v354
    %765 = vmatprep.subr.mxu0 %v359
    %766 = vmatpush1.msra.mxu0 %v358
    %767 = vmatprep.subr.mxu0 %v363
    %768 = vmatpush1.msra.mxu0 %v362
    %769 = vmatprep.subr.mxu0 %v367
    %770 = vmatpush1.msra.mxu0 %v366
    %771 = vmatprep.subr.mxu0 %v371
    %772 = vmatpush1.msra.mxu0 %v370
    %773 = vmatprep.subr.mxu0 %v375
    %774 = vmatpush1.msra.mxu0 %v374
    %775 = vmatprep.subr.mxu0 %v379
    %776 = vmatpush1.msra.mxu0 %v378
    %777 = vmatprep.subr.mxu0 %v383
    %778 = vmatpush1.msra.mxu0 %v382
    %779 = vmatprep.subr.mxu0 %v387
    %780 = vmatpush1.msra.mxu0 %v386
    %781 = vmatprep.subr.mxu0 %v391
    %782 = vmatpush1.msra.mxu0 %v390
    %783 = vmatprep.subr.mxu0 %v395
    %784 = vmatpush1.msra.mxu0 %v394
    %785 = vmatprep.subr.mxu0 %v399
    %786 = vmatpush1.msra.mxu0 %v398
    %787 = vmatprep.subr.mxu0 %v403
    %788 = vmatpush1.msra.mxu0 %v402
    %789 = vmatprep.subr.mxu0 %v407
    %790 = vmatpush1.msra.mxu0 %v406
    %791 = vmatprep.subr.mxu0 %v411
    %792 = vmatpush1.msra.mxu0 %v410
    %793 = vmatprep.subr.mxu0 %v415
    %794 = vmatpush1.msra.mxu0 %v414
    %795 = vmatprep.subr.mxu0 0.0
    %796 = vmatpush1.msra.mxu0 0.0
    %797 = vmatprep.subr.mxu0 0.0
    %798 = vmatpush1.msra.mxu0 0.0
    %799 = vmatprep.subr.mxu0 0.0
    %800 = vmatpush1.msra.mxu0 0.0
    %801 = vmatprep.subr.mxu0 0.0
    %802 = vmatpush1.msra.mxu0 0.0
    %803 = vmatprep.subr.mxu0 0.0
    %804 = vmatpush1.msra.mxu0 0.0
    %805 = vmatprep.subr.mxu0 0.0
    %806 = vmatpush1.msra.mxu0 0.0
    %807 = vmatprep.subr.mxu0 0.0
    %808 = vmatpush1.msra.mxu0 0.0
    %809 = vmatprep.subr.mxu0 0.0
    %810 = vmatpush1.msra.mxu0 0.0
    %811 = vmatprep.subr.mxu0 0.0
    %812 = vmatpush1.msra.mxu0 0.0
    %813 = vmatprep.subr.mxu0 0.0
    %814 = vmatpush1.msra.mxu0 0.0
    %815 = vmatprep.subr.mxu0 0.0
    %816 = vmatpush1.msra.mxu0 0.0
    %817 = vmatprep.subr.mxu0 0.0
    %818 = vmatpush1.msra.mxu0 0.0
    %819 = vmatprep.subr.mxu0 0.0
    %820 = vmatpush1.msra.mxu0 0.0
    %821 = vmatprep.subr.mxu0 0.0
    %822 = vmatpush1.msra.mxu0 0.0
    %823 = vmatprep.subr.mxu0 0.0
    %824 = vmatpush1.msra.mxu0 0.0
    %825 = vmatprep.subr.mxu0 0.0
    %826 = vmatpush1.msra.mxu0 0.0
    %827 = vmatprep.mubr.f32.mxu0 0.0
    %828 = vmatmul.mubr.f32.gmra.mrb[0].mxu0 %v760
    %v829 = vpop.f32.mrb[0].mxu0
    %v830 = vadd.f32 0.0, %v829
    %v831 = vpop.f32.mrb[0].mxu0
    %v832 = vadd.f32 0.0, %v831
    %833 = vdwg.mxu0
    %834 = vmatprep.subr.mxu0 %v357
    %835 = vmatpush1.msra.mxu0 %v356
    %836 = vmatprep.subr.mxu0 %v361
    %837 = vmatpush1.msra.mxu0 %v360
    %838 = vmatprep.subr.mxu0 %v365
    %839 = vmatpush1.msra.mxu0 %v364
    %840 = vmatprep.subr.mxu0 %v369
    %841 = vmatpush1.msra.mxu0 %v368
    %842 = vmatprep.subr.mxu0 %v373
    %843 = vmatpush1.msra.mxu0 %v372
    %844 = vmatprep.subr.mxu0 %v377
    %845 = vmatpush1.msra.mxu0 %v376
    %846 = vmatprep.subr.mxu0 %v381
    %847 = vmatpush1.msra.mxu0 %v380
    %848 = vmatprep.subr.mxu0 %v385
    %849 = vmatpush1.msra.mxu0 %v384
    %850 = vmatprep.subr.mxu0 %v389
    %851 = vmatpush1.msra.mxu0 %v388
    %852 = vmatprep.subr.mxu0 %v393
    %853 = vmatpush1.msra.mxu0 %v392
    %854 = vmatprep.subr.mxu0 %v397
    %855 = vmatpush1.msra.mxu0 %v396
    %856 = vmatprep.subr.mxu0 %v401
    %857 = vmatpush1.msra.mxu0 %v400
    %858 = vmatprep.subr.mxu0 %v405
    %859 = vmatpush1.msra.mxu0 %v404
    %860 = vmatprep.subr.mxu0 %v409
    %861 = vmatpush1.msra.mxu0 %v408
    %862 = vmatprep.subr.mxu0 %v413
    %863 = vmatpush1.msra.mxu0 %v412
    %864 = vmatprep.subr.mxu0 %v417
    %865 = vmatpush1.msra.mxu0 %v416
    %866 = vmatprep.subr.mxu0 0.0
    %867 = vmatpush1.msra.mxu0 0.0
    %868 = vmatprep.subr.mxu0 0.0
    %869 = vmatpush1.msra.mxu0 0.0
    %870 = vmatprep.subr.mxu0 0.0
    %871 = vmatpush1.msra.mxu0 0.0
    %872 = vmatprep.subr.mxu0 0.0
    %873 = vmatpush1.msra.mxu0 0.0
    %874 = vmatprep.subr.mxu0 0.0
    %875 = vmatpush1.msra.mxu0 0.0
    %876 = vmatprep.subr.mxu0 0.0
    %877 = vmatpush1.msra.mxu0 0.0
    %878 = vmatprep.subr.mxu0 0.0
    %879 = vmatpush1.msra.mxu0 0.0
    %880 = vmatprep.subr.mxu0 0.0
    %881 = vmatpush1.msra.mxu0 0.0
    %882 = vmatprep.subr.mxu0 0.0
    %883 = vmatpush1.msra.mxu0 0.0
    %884 = vmatprep.subr.mxu0 0.0
    %885 = vmatpush1.msra.mxu0 0.0
    %886 = vmatprep.subr.mxu0 0.0
    %887 = vmatpush1.msra.mxu0 0.0
    %888 = vmatprep.subr.mxu0 0.0
    %889 = vmatpush1.msra.mxu0 0.0
    %890 = vmatprep.subr.mxu0 0.0
    %891 = vmatpush1.msra.mxu0 0.0
    %892 = vmatprep.subr.mxu0 0.0
    %893 = vmatpush1.msra.mxu0 0.0
    %894 = vmatprep.subr.mxu0 0.0
    %895 = vmatpush1.msra.mxu0 0.0
    %896 = vmatprep.subr.mxu0 0.0
    %897 = vmatpush1.msra.mxu0 0.0
    %898 = vmatprep.mubr.f32.mxu0 0.0
    %899 = vmatmul.mubr.f32.gmra.mrb[0].mxu0 %v760
    %v900 = vpop.f32.mrb[0].mxu0
    %v901 = vadd.f32 0.0, %v900
    %v902 = vpop.f32.mrb[0].mxu0
    %v903 = vadd.f32 0.0, %v902
    %904 = vdwg.mxu0
    %v905 = vadd.f32 %v207, %v830
    %v906 = vadd.f32 %v209, %v832
    %v907 = vadd.f32 %v320, %v901
    %v908 = vadd.f32 %v322, %v903
    %v909 = vxor.u32 %v905, 2147483648
    %v910 = vmul.f32 %v909, 1.442695
    %v911 = vpow.pop %v910
    %v912 = vadd.f32 %v911, 1.0
    %v913 = vrcp.pop %v912
    %v914 = vmul.f32 1.0, %v913
    %v915 = vxor.u32 %v906, 2147483648
    %v916 = vmul.f32 %v915, 1.442695
    %v917 = vpow.pop %v916
    %v918 = vadd.f32 %v917, 1.0
    %v919 = vrcp.pop %v918
    %v920 = vmul.f32 1.0, %v919
    %v921 = vtanh.pop %v907
    %v922 = vxor.u32 %v908, 2147483648
    %v923 = vmul.f32 %v922, 1.442695
    %v924 = vpow.pop %v923
    %v925 = vadd.f32 %v924, 1.0
    %v926 = vrcp.pop %v925
    %v927 = vmul.f32 1.0, %v926
    %v928 = vmul.f32 %v920, %v758
    %v929 = vmul.f32 %v914, %v921
    %v930 = vadd.f32 %v928, %v929
    %v931 = vtanh.pop %v930
    %v932 = vmul.f32 %v927, %v931
    %s933 = scalar_lea.vmem [#allocation10], 16
    %934 = vst [vmem:[%s933] sm:$0xff] %v932
    %935 = vmatprep.subr.mxu0 %v355
    %936 = vmatpush1.msra.mxu0 %v354
    %937 = vmatprep.subr.mxu0 %v359
    %938 = vmatpush1.msra.mxu0 %v358
    %939 = vmatprep.subr.mxu0 %v363
    %940 = vmatpush1.msra.mxu0 %v362
    %941 = vmatprep.subr.mxu0 %v367
    %942 = vmatpush1.msra.mxu0 %v366
    %943 = vmatprep.subr.mxu0 %v371
    %944 = vmatpush1.msra.mxu0 %v370
    %945 = vmatprep.subr.mxu0 %v375
    %946 = vmatpush1.msra.mxu0 %v374
    %947 = vmatprep.subr.mxu0 %v379
    %948 = vmatpush1.msra.mxu0 %v378
    %949 = vmatprep.subr.mxu0 %v383
    %950 = vmatpush1.msra.mxu0 %v382
    %951 = vmatprep.subr.mxu0 %v387
    %952 = vmatpush1.msra.mxu0 %v386
    %953 = vmatprep.subr.mxu0 %v391
    %954 = vmatpush1.msra.mxu0 %v390
    %955 = vmatprep.subr.mxu0 %v395
    %956 = vmatpush1.msra.mxu0 %v394
    %957 = vmatprep.subr.mxu0 %v399
    %958 = vmatpush1.msra.mxu0 %v398
    %959 = vmatprep.subr.mxu0 %v403
    %960 = vmatpush1.msra.mxu0 %v402
    %961 = vmatprep.subr.mxu0 %v407
    %962 = vmatpush1.msra.mxu0 %v406
    %963 = vmatprep.subr.mxu0 %v411
    %964 = vmatpush1.msra.mxu0 %v410
    %965 = vmatprep.subr.mxu0 %v415
    %966 = vmatpush1.msra.mxu0 %v414
    %967 = vmatprep.subr.mxu0 0.0
    %968 = vmatpush1.msra.mxu0 0.0
    %969 = vmatprep.subr.mxu0 0.0
    %970 = vmatpush1.msra.mxu0 0.0
    %971 = vmatprep.subr.mxu0 0.0
    %972 = vmatpush1.msra.mxu0 0.0
    %973 = vmatprep.subr.mxu0 0.0
    %974 = vmatpush1.msra.mxu0 0.0
    %975 = vmatprep.subr.mxu0 0.0
    %976 = vmatpush1.msra.mxu0 0.0
    %977 = vmatprep.subr.mxu0 0.0
    %978 = vmatpush1.msra.mxu0 0.0
    %979 = vmatprep.subr.mxu0 0.0
    %980 = vmatpush1.msra.mxu0 0.0
    %981 = vmatprep.subr.mxu0 0.0
    %982 = vmatpush1.msra.mxu0 0.0
    %983 = vmatprep.subr.mxu0 0.0
    %984 = vmatpush1.msra.mxu0 0.0
    %985 = vmatprep.subr.mxu0 0.0
    %986 = vmatpush1.msra.mxu0 0.0
    %987 = vmatprep.subr.mxu0 0.0
    %988 = vmatpush1.msra.mxu0 0.0
    %989 = vmatprep.subr.mxu0 0.0
    %990 = vmatpush1.msra.mxu0 0.0
    %991 = vmatprep.subr.mxu0 0.0
    %992 = vmatpush1.msra.mxu0 0.0
    %993 = vmatprep.subr.mxu0 0.0
    %994 = vmatpush1.msra.mxu0 0.0
    %995 = vmatprep.subr.mxu0 0.0
    %996 = vmatpush1.msra.mxu0 0.0
    %997 = vmatprep.subr.mxu0 0.0
    %998 = vmatpush1.msra.mxu0 0.0
    %999 = vmatprep.mubr.f32.mxu0 0.0
    %1000 = vmatmul.mubr.f32.gmra.mrb[0].mxu0 %v932
    %v1001 = vpop.f32.mrb[0].mxu0
    %v1002 = vadd.f32 0.0, %v1001
    %v1003 = vpop.f32.mrb[0].mxu0
    %v1004 = vadd.f32 0.0, %v1003
    %1005 = vdwg.mxu0
    %1006 = vmatprep.subr.mxu0 %v357
    %1007 = vmatpush1.msra.mxu0 %v356
    %1008 = vmatprep.subr.mxu0 %v361
    %1009 = vmatpush1.msra.mxu0 %v360
    %1010 = vmatprep.subr.mxu0 %v365
    %1011 = vmatpush1.msra.mxu0 %v364
    %1012 = vmatprep.subr.mxu0 %v369
    %1013 = vmatpush1.msra.mxu0 %v368
    %1014 = vmatprep.subr.mxu0 %v373
    %1015 = vmatpush1.msra.mxu0 %v372
    %1016 = vmatprep.subr.mxu0 %v377
    %1017 = vmatpush1.msra.mxu0 %v376
    %1018 = vmatprep.subr.mxu0 %v381
    %1019 = vmatpush1.msra.mxu0 %v380
    %1020 = vmatprep.subr.mxu0 %v385
    %1021 = vmatpush1.msra.mxu0 %v384
    %1022 = vmatprep.subr.mxu0 %v389
    %1023 = vmatpush1.msra.mxu0 %v388
    %1024 = vmatprep.subr.mxu0 %v393
    %1025 = vmatpush1.msra.mxu0 %v392
    %1026 = vmatprep.subr.mxu0 %v397
    %1027 = vmatpush1.msra.mxu0 %v396
    %1028 = vmatprep.subr.mxu0 %v401
    %1029 = vmatpush1.msra.mxu0 %v400
    %1030 = vmatprep.subr.mxu0 %v405
    %1031 = vmatpush1.msra.mxu0 %v404
    %1032 = vmatprep.subr.mxu0 %v409
    %1033 = vmatpush1.msra.mxu0 %v408
    %1034 = vmatprep.subr.mxu0 %v413
    %1035 = vmatpush1.msra.mxu0 %v412
    %1036 = vmatprep.subr.mxu0 %v417
    %1037 = vmatpush1.msra.mxu0 %v416
    %1038 = vmatprep.subr.mxu0 0.0
    %1039 = vmatpush1.msra.mxu0 0.0
    %1040 = vmatprep.subr.mxu0 0.0
    %1041 = vmatpush1.msra.mxu0 0.0
    %1042 = vmatprep.subr.mxu0 0.0
    %1043 = vmatpush1.msra.mxu0 0.0
    %1044 = vmatprep.subr.mxu0 0.0
    %1045 = vmatpush1.msra.mxu0 0.0
    %1046 = vmatprep.subr.mxu0 0.0
    %1047 = vmatpush1.msra.mxu0 0.0
    %1048 = vmatprep.subr.mxu0 0.0
    %1049 = vmatpush1.msra.mxu0 0.0
    %1050 = vmatprep.subr.mxu0 0.0
    %1051 = vmatpush1.msra.mxu0 0.0
    %1052 = vmatprep.subr.mxu0 0.0
    %1053 = vmatpush1.msra.mxu0 0.0
    %1054 = vmatprep.subr.mxu0 0.0
    %1055 = vmatpush1.msra.mxu0 0.0
    %1056 = vmatprep.subr.mxu0 0.0
    %1057 = vmatpush1.msra.mxu0 0.0
    %1058 = vmatprep.subr.mxu0 0.0
    %1059 = vmatpush1.msra.mxu0 0.0
    %1060 = vmatprep.subr.mxu0 0.0
    %1061 = vmatpush1.msra.mxu0 0.0
    %1062 = vmatprep.subr.mxu0 0.0
    %1063 = vmatpush1.msra.mxu0 0.0
    %1064 = vmatprep.subr.mxu0 0.0
    %1065 = vmatpush1.msra.mxu0 0.0
    %1066 = vmatprep.subr.mxu0 0.0
    %1067 = vmatpush1.msra.mxu0 0.0
    %1068 = vmatprep.subr.mxu0 0.0
    %1069 = vmatpush1.msra.mxu0 0.0
    %1070 = vmatprep.mubr.f32.mxu0 0.0
    %1071 = vmatmul.mubr.f32.gmra.mrb[0].mxu0 %v932
    %v1072 = vpop.f32.mrb[0].mxu0
    %v1073 = vadd.f32 0.0, %v1072
    %v1074 = vpop.f32.mrb[0].mxu0
    %v1075 = vadd.f32 0.0, %v1074
    %1076 = vdwg.mxu0
    %v1077 = vadd.f32 %v213, %v1002
    %v1078 = vadd.f32 %v215, %v1004
    %v1079 = vadd.f32 %v326, %v1073
    %v1080 = vadd.f32 %v328, %v1075
    %v1081 = vxor.u32 %v1077, 2147483648
    %v1082 = vmul.f32 %v1081, 1.442695
    %v1083 = vpow.pop %v1082
    %v1084 = vadd.f32 %v1083, 1.0
    %v1085 = vrcp.pop %v1084
    %v1086 = vmul.f32 1.0, %v1085
    %v1087 = vxor.u32 %v1078, 2147483648
    %v1088 = vmul.f32 %v1087, 1.442695
    %v1089 = vpow.pop %v1088
    %v1090 = vadd.f32 %v1089, 1.0
    %v1091 = vrcp.pop %v1090
    %v1092 = vmul.f32 1.0, %v1091
    %v1093 = vtanh.pop %v1079
    %v1094 = vxor.u32 %v1080, 2147483648
    %v1095 = vmul.f32 %v1094, 1.442695
    %v1096 = vpow.pop %v1095
    %v1097 = vadd.f32 %v1096, 1.0
    %v1098 = vrcp.pop %v1097
    %v1099 = vmul.f32 1.0, %v1098
    %v1100 = vmul.f32 %v1092, %v930
    %v1101 = vmul.f32 %v1086, %v1093
    %v1102 = vadd.f32 %v1100, %v1101
    %v1103 = vtanh.pop %v1102
    %v1104 = vmul.f32 %v1099, %v1103
    %s1105 = scalar_lea.vmem [#allocation10], 24
    %1106 = vst [vmem:[%s1105] sm:$0xff] %v1104
    %1107 = vmatprep.subr.mxu0 %v355
    %1108 = vmatpush1.msra.mxu0 %v354
    %1109 = vmatprep.subr.mxu0 %v359
    %1110 = vmatpush1.msra.mxu0 %v358
    %1111 = vmatprep.subr.mxu0 %v363
    %1112 = vmatpush1.msra.mxu0 %v362
    %1113 = vmatprep.subr.mxu0 %v367
    %1114 = vmatpush1.msra.mxu0 %v366
    %1115 = vmatprep.subr.mxu0 %v371
    %1116 = vmatpush1.msra.mxu0 %v370
    %1117 = vmatprep.subr.mxu0 %v375
    %1118 = vmatpush1.msra.mxu0 %v374
    %1119 = vmatprep.subr.mxu0 %v379
    %1120 = vmatpush1.msra.mxu0 %v378
    %1121 = vmatprep.subr.mxu0 %v383
    %1122 = vmatpush1.msra.mxu0 %v382
    %1123 = vmatprep.subr.mxu0 %v387
    %1124 = vmatpush1.msra.mxu0 %v386
    %1125 = vmatprep.subr.mxu0 %v391
    %1126 = vmatpush1.msra.mxu0 %v390
    %1127 = vmatprep.subr.mxu0 %v395
    %1128 = vmatpush1.msra.mxu0 %v394
    %1129 = vmatprep.subr.mxu0 %v399
    %1130 = vmatpush1.msra.mxu0 %v398
    %1131 = vmatprep.subr.mxu0 %v403
    %1132 = vmatpush1.msra.mxu0 %v402
    %1133 = vmatprep.subr.mxu0 %v407
    %1134 = vmatpush1.msra.mxu0 %v406
    %1135 = vmatprep.subr.mxu0 %v411
    %1136 = vmatpush1.msra.mxu0 %v410
    %1137 = vmatprep.subr.mxu0 %v415
    %1138 = vmatpush1.msra.mxu0 %v414
    %1139 = vmatprep.subr.mxu0 0.0
    %1140 = vmatpush1.msra.mxu0 0.0
    %1141 = vmatprep.subr.mxu0 0.0
    %1142 = vmatpush1.msra.mxu0 0.0
    %1143 = vmatprep.subr.mxu0 0.0
    %1144 = vmatpush1.msra.mxu0 0.0
    %1145 = vmatprep.subr.mxu0 0.0
    %1146 = vmatpush1.msra.mxu0 0.0
    %1147 = vmatprep.subr.mxu0 0.0
    %1148 = vmatpush1.msra.mxu0 0.0
    %1149 = vmatprep.subr.mxu0 0.0
    %1150 = vmatpush1.msra.mxu0 0.0
    %1151 = vmatprep.subr.mxu0 0.0
    %1152 = vmatpush1.msra.mxu0 0.0
    %1153 = vmatprep.subr.mxu0 0.0
    %1154 = vmatpush1.msra.mxu0 0.0
    %1155 = vmatprep.subr.mxu0 0.0
    %1156 = vmatpush1.msra.mxu0 0.0
    %1157 = vmatprep.subr.mxu0 0.0
    %1158 = vmatpush1.msra.mxu0 0.0
    %1159 = vmatprep.subr.mxu0 0.0
    %1160 = vmatpush1.msra.mxu0 0.0
    %1161 = vmatprep.subr.mxu0 0.0
    %1162 = vmatpush1.msra.mxu0 0.0
    %1163 = vmatprep.subr.mxu0 0.0
    %1164 = vmatpush1.msra.mxu0 0.0
    %1165 = vmatprep.subr.mxu0 0.0
    %1166 = vmatpush1.msra.mxu0 0.0
    %1167 = vmatprep.subr.mxu0 0.0
    %1168 = vmatpush1.msra.mxu0 0.0
    %1169 = vmatprep.subr.mxu0 0.0
    %1170 = vmatpush1.msra.mxu0 0.0
    %1171 = vmatprep.mubr.f32.mxu0 0.0
    %1172 = vmatmul.mubr.f32.gmra.mrb[0].mxu0 %v1104
    %v1173 = vpop.f32.mrb[0].mxu0
    %v1174 = vadd.f32 0.0, %v1173
    %v1175 = vpop.f32.mrb[0].mxu0
    %v1176 = vadd.f32 0.0, %v1175
    %1177 = vdwg.mxu0
    %1178 = vmatprep.subr.mxu0 %v357
    %1179 = vmatpush1.msra.mxu0 %v356
    %1180 = vmatprep.subr.mxu0 %v361
    %1181 = vmatpush1.msra.mxu0 %v360
    %1182 = vmatprep.subr.mxu0 %v365
    %1183 = vmatpush1.msra.mxu0 %v364
    %1184 = vmatprep.subr.mxu0 %v369
    %1185 = vmatpush1.msra.mxu0 %v368
    %1186 = vmatprep.subr.mxu0 %v373
    %1187 = vmatpush1.msra.mxu0 %v372
    %1188 = vmatprep.subr.mxu0 %v377
    %1189 = vmatpush1.msra.mxu0 %v376
    %1190 = vmatprep.subr.mxu0 %v381
    %1191 = vmatpush1.msra.mxu0 %v380
    %1192 = vmatprep.subr.mxu0 %v385
    %1193 = vmatpush1.msra.mxu0 %v384
    %1194 = vmatprep.subr.mxu0 %v389
    %1195 = vmatpush1.msra.mxu0 %v388
    %1196 = vmatprep.subr.mxu0 %v393
    %1197 = vmatpush1.msra.mxu0 %v392
    %1198 = vmatprep.subr.mxu0 %v397
    %1199 = vmatpush1.msra.mxu0 %v396
    %1200 = vmatprep.subr.mxu0 %v401
    %1201 = vmatpush1.msra.mxu0 %v400
    %1202 = vmatprep.subr.mxu0 %v405
    %1203 = vmatpush1.msra.mxu0 %v404
    %1204 = vmatprep.subr.mxu0 %v409
    %1205 = vmatpush1.msra.mxu0 %v408
    %1206 = vmatprep.subr.mxu0 %v413
    %1207 = vmatpush1.msra.mxu0 %v412
    %1208 = vmatprep.subr.mxu0 %v417
    %1209 = vmatpush1.msra.mxu0 %v416
    %1210 = vmatprep.subr.mxu0 0.0
    %1211 = vmatpush1.msra.mxu0 0.0
    %1212 = vmatprep.subr.mxu0 0.0
    %1213 = vmatpush1.msra.mxu0 0.0
    %1214 = vmatprep.subr.mxu0 0.0
    %1215 = vmatpush1.msra.mxu0 0.0
    %1216 = vmatprep.subr.mxu0 0.0
    %1217 = vmatpush1.msra.mxu0 0.0
    %1218 = vmatprep.subr.mxu0 0.0
    %1219 = vmatpush1.msra.mxu0 0.0
    %1220 = vmatprep.subr.mxu0 0.0
    %1221 = vmatpush1.msra.mxu0 0.0
    %1222 = vmatprep.subr.mxu0 0.0
    %1223 = vmatpush1.msra.mxu0 0.0
    %1224 = vmatprep.subr.mxu0 0.0
    %1225 = vmatpush1.msra.mxu0 0.0
    %1226 = vmatprep.subr.mxu0 0.0
    %1227 = vmatpush1.msra.mxu0 0.0
    %1228 = vmatprep.subr.mxu0 0.0
    %1229 = vmatpush1.msra.mxu0 0.0
    %1230 = vmatprep.subr.mxu0 0.0
    %1231 = vmatpush1.msra.mxu0 0.0
    %1232 = vmatprep.subr.mxu0 0.0
    %1233 = vmatpush1.msra.mxu0 0.0
    %1234 = vmatprep.subr.mxu0 0.0
    %1235 = vmatpush1.msra.mxu0 0.0
    %1236 = vmatprep.subr.mxu0 0.0
    %1237 = vmatpush1.msra.mxu0 0.0
    %1238 = vmatprep.subr.mxu0 0.0
    %1239 = vmatpush1.msra.mxu0 0.0
    %1240 = vmatprep.subr.mxu0 0.0
    %1241 = vmatpush1.msra.mxu0 0.0
    %1242 = vmatprep.mubr.f32.mxu0 0.0
    %1243 = vmatmul.mubr.f32.gmra.mrb[0].mxu0 %v1104
    %v1244 = vpop.f32.mrb[0].mxu0
    %v1245 = vadd.f32 0.0, %v1244
    %v1246 = vpop.f32.mrb[0].mxu0
    %v1247 = vadd.f32 0.0, %v1246
    %1248 = vdwg.mxu0
    %v1249 = vadd.f32 %v219, %v1174
    %v1250 = vadd.f32 %v221, %v1176
    %v1251 = vadd.f32 %v332, %v1245
    %v1252 = vadd.f32 %v334, %v1247
    %v1253 = vxor.u32 %v1249, 2147483648
    %v1254 = vmul.f32 %v1253, 1.442695
    %v1255 = vpow.pop %v1254
    %v1256 = vadd.f32 %v1255, 1.0
    %v1257 = vrcp.pop %v1256
    %v1258 = vmul.f32 1.0, %v1257
    %v1259 = vxor.u32 %v1250, 2147483648
    %v1260 = vmul.f32 %v1259, 1.442695
    %v1261 = vpow.pop %v1260
    %v1262 = vadd.f32 %v1261, 1.0
    %v1263 = vrcp.pop %v1262
    %v1264 = vmul.f32 1.0, %v1263
    %v1265 = vtanh.pop %v1251
    %v1266 = vxor.u32 %v1252, 2147483648
    %v1267 = vmul.f32 %v1266, 1.442695
    %v1268 = vpow.pop %v1267
    %v1269 = vadd.f32 %v1268, 1.0
    %v1270 = vrcp.pop %v1269
    %v1271 = vmul.f32 1.0, %v1270
    %v1272 = vmul.f32 %v1264, %v1102
    %v1273 = vmul.f32 %v1258, %v1265
    %v1274 = vadd.f32 %v1272, %v1273
    %v1275 = vtanh.pop %v1274
    %v1276 = vmul.f32 %v1271, %v1275
    %s1277 = scalar_lea.vmem [#allocation10], 32
    %1278 = vst [vmem:[%s1277] sm:$0xff] %v1276
    %1279 = vmatprep.subr.mxu0 %v355
    %1280 = vmatpush1.msra.mxu0 %v354
    %1281 = vmatprep.subr.mxu0 %v359
    %1282 = vmatpush1.msra.mxu0 %v358
    %1283 = vmatprep.subr.mxu0 %v363
    %1284 = vmatpush1.msra.mxu0 %v362
    %1285 = vmatprep.subr.mxu0 %v367
    %1286 = vmatpush1.msra.mxu0 %v366
    %1287 = vmatprep.subr.mxu0 %v371
    %1288 = vmatpush1.msra.mxu0 %v370
    %1289 = vmatprep.subr.mxu0 %v375
    %1290 = vmatpush1.msra.mxu0 %v374
    %1291 = vmatprep.subr.mxu0 %v379
    %1292 = vmatpush1.msra.mxu0 %v378
    %1293 = vmatprep.subr.mxu0 %v383
    %1294 = vmatpush1.msra.mxu0 %v382
    %1295 = vmatprep.subr.mxu0 %v387
    %1296 = vmatpush1.msra.mxu0 %v386
    %1297 = vmatprep.subr.mxu0 %v391
    %1298 = vmatpush1.msra.mxu0 %v390
    %1299 = vmatprep.subr.mxu0 %v395
    %1300 = vmatpush1.msra.mxu0 %v394
    %1301 = vmatprep.subr.mxu0 %v399
    %1302 = vmatpush1.msra.mxu0 %v398
    %1303 = vmatprep.subr.mxu0 %v403
    %1304 = vmatpush1.msra.mxu0 %v402
    %1305 = vmatprep.subr.mxu0 %v407
    %1306 = vmatpush1.msra.mxu0 %v406
    %1307 = vmatprep.subr.mxu0 %v411
    %1308 = vmatpush1.msra.mxu0 %v410
    %1309 = vmatprep.subr.mxu0 %v415
    %1310 = vmatpush1.msra.mxu0 %v414
    %1311 = vmatprep.subr.mxu0 0.0
    %1312 = vmatpush1.msra.mxu0 0.0
    %1313 = vmatprep.subr.mxu0 0.0
    %1314 = vmatpush1.msra.mxu0 0.0
    %1315 = vmatprep.subr.mxu0 0.0
    %1316 = vmatpush1.msra.mxu0 0.0
    %1317 = vmatprep.subr.mxu0 0.0
    %1318 = vmatpush1.msra.mxu0 0.0
    %1319 = vmatprep.subr.mxu0 0.0
    %1320 = vmatpush1.msra.mxu0 0.0
    %1321 = vmatprep.subr.mxu0 0.0
    %1322 = vmatpush1.msra.mxu0 0.0
    %1323 = vmatprep.subr.mxu0 0.0
    %1324 = vmatpush1.msra.mxu0 0.0
    %1325 = vmatprep.subr.mxu0 0.0
    %1326 = vmatpush1.msra.mxu0 0.0
    %1327 = vmatprep.subr.mxu0 0.0
    %1328 = vmatpush1.msra.mxu0 0.0
    %1329 = vmatprep.subr.mxu0 0.0
    %1330 = vmatpush1.msra.mxu0 0.0
    %1331 = vmatprep.subr.mxu0 0.0
    %1332 = vmatpush1.msra.mxu0 0.0
    %1333 = vmatprep.subr.mxu0 0.0
    %1334 = vmatpush1.msra.mxu0 0.0
    %1335 = vmatprep.subr.mxu0 0.0
    %1336 = vmatpush1.msra.mxu0 0.0
    %1337 = vmatprep.subr.mxu0 0.0
    %1338 = vmatpush1.msra.mxu0 0.0
    %1339 = vmatprep.subr.mxu0 0.0
    %1340 = vmatpush1.msra.mxu0 0.0
    %1341 = vmatprep.subr.mxu0 0.0
    %1342 = vmatpush1.msra.mxu0 0.0
    %1343 = vmatprep.mubr.f32.mxu0 0.0
    %1344 = vmatmul.mubr.f32.gmra.mrb[0].mxu0 %v1276
    %v1345 = vpop.f32.mrb[0].mxu0
    %v1346 = vadd.f32 0.0, %v1345
    %v1347 = vpop.f32.mrb[0].mxu0
    %v1348 = vadd.f32 0.0, %v1347
    %1349 = vdwg.mxu0
    %1350 = vmatprep.subr.mxu0 %v357
    %1351 = vmatpush1.msra.mxu0 %v356
    %1352 = vmatprep.subr.mxu0 %v361
    %1353 = vmatpush1.msra.mxu0 %v360
    %1354 = vmatprep.subr.mxu0 %v365
    %1355 = vmatpush1.msra.mxu0 %v364
    %1356 = vmatprep.subr.mxu0 %v369
    %1357 = vmatpush1.msra.mxu0 %v368
    %1358 = vmatprep.subr.mxu0 %v373
    %1359 = vmatpush1.msra.mxu0 %v372
    %1360 = vmatprep.subr.mxu0 %v377
    %1361 = vmatpush1.msra.mxu0 %v376
    %1362 = vmatprep.subr.mxu0 %v381
    %1363 = vmatpush1.msra.mxu0 %v380
    %1364 = vmatprep.subr.mxu0 %v385
    %1365 = vmatpush1.msra.mxu0 %v384
    %1366 = vmatprep.subr.mxu0 %v389
    %1367 = vmatpush1.msra.mxu0 %v388
    %1368 = vmatprep.subr.mxu0 %v393
    %1369 = vmatpush1.msra.mxu0 %v392
    %1370 = vmatprep.subr.mxu0 %v397
    %1371 = vmatpush1.msra.mxu0 %v396
    %1372 = vmatprep.subr.mxu0 %v401
    %1373 = vmatpush1.msra.mxu0 %v400
    %1374 = vmatprep.subr.mxu0 %v405
    %1375 = vmatpush1.msra.mxu0 %v404
    %1376 = vmatprep.subr.mxu0 %v409
    %1377 = vmatpush1.msra.mxu0 %v408
    %1378 = vmatprep.subr.mxu0 %v413
    %1379 = vmatpush1.msra.mxu0 %v412
    %1380 = vmatprep.subr.mxu0 %v417
    %1381 = vmatpush1.msra.mxu0 %v416
    %1382 = vmatprep.subr.mxu0 0.0
    %1383 = vmatpush1.msra.mxu0 0.0
    %1384 = vmatprep.subr.mxu0 0.0
    %1385 = vmatpush1.msra.mxu0 0.0
    %1386 = vmatprep.subr.mxu0 0.0
    %1387 = vmatpush1.msra.mxu0 0.0
    %1388 = vmatprep.subr.mxu0 0.0
    %1389 = vmatpush1.msra.mxu0 0.0
    %1390 = vmatprep.subr.mxu0 0.0
    %1391 = vmatpush1.msra.mxu0 0.0
    %1392 = vmatprep.subr.mxu0 0.0
    %1393 = vmatpush1.msra.mxu0 0.0
    %1394 = vmatprep.subr.mxu0 0.0
    %1395 = vmatpush1.msra.mxu0 0.0
    %1396 = vmatprep.subr.mxu0 0.0
    %1397 = vmatpush1.msra.mxu0 0.0
    %1398 = vmatprep.subr.mxu0 0.0
    %1399 = vmatpush1.msra.mxu0 0.0
    %1400 = vmatprep.subr.mxu0 0.0
    %1401 = vmatpush1.msra.mxu0 0.0
    %1402 = vmatprep.subr.mxu0 0.0
    %1403 = vmatpush1.msra.mxu0 0.0
    %1404 = vmatprep.subr.mxu0 0.0
    %1405 = vmatpush1.msra.mxu0 0.0
    %1406 = vmatprep.subr.mxu0 0.0
    %1407 = vmatpush1.msra.mxu0 0.0
    %1408 = vmatprep.subr.mxu0 0.0
    %1409 = vmatpush1.msra.mxu0 0.0
    %1410 = vmatprep.subr.mxu0 0.0
    %1411 = vmatpush1.msra.mxu0 0.0
    %1412 = vmatprep.subr.mxu0 0.0
    %1413 = vmatpush1.msra.mxu0 0.0
    %1414 = vmatprep.mubr.f32.mxu0 0.0
    %1415 = vmatmul.mubr.f32.gmra.mrb[0].mxu0 %v1276
    %v1416 = vpop.f32.mrb[0].mxu0
    %v1417 = vadd.f32 0.0, %v1416
    %v1418 = vpop.f32.mrb[0].mxu0
    %v1419 = vadd.f32 0.0, %v1418
    %1420 = vdwg.mxu0
    %v1421 = vadd.f32 %v225, %v1346
    %v1422 = vadd.f32 %v227, %v1348
    %v1423 = vadd.f32 %v338, %v1417
    %v1424 = vadd.f32 %v340, %v1419
    %v1425 = vxor.u32 %v1421, 2147483648
    %v1426 = vmul.f32 %v1425, 1.442695
    %v1427 = vpow.pop %v1426
    %v1428 = vadd.f32 %v1427, 1.0
    %v1429 = vrcp.pop %v1428
    %v1430 = vmul.f32 1.0, %v1429
    %v1431 = vxor.u32 %v1422, 2147483648
    %v1432 = vmul.f32 %v1431, 1.442695
    %v1433 = vpow.pop %v1432
    %v1434 = vadd.f32 %v1433, 1.0
    %v1435 = vrcp.pop %v1434
    %v1436 = vmul.f32 1.0, %v1435
    %v1437 = vtanh.pop %v1423
    %v1438 = vxor.u32 %v1424, 2147483648
    %v1439 = vmul.f32 %v1438, 1.442695
    %v1440 = vpow.pop %v1439
    %v1441 = vadd.f32 %v1440, 1.0
    %v1442 = vrcp.pop %v1441
    %v1443 = vmul.f32 1.0, %v1442
    %v1444 = vmul.f32 %v1436, %v1274
    %v1445 = vmul.f32 %v1430, %v1437
    %v1446 = vadd.f32 %v1444, %v1445
    %v1447 = vtanh.pop %v1446
    %v1448 = vmul.f32 %v1443, %v1447
    %s1449 = scalar_lea.vmem [#allocation10], 40
    %1450 = vst [vmem:[%s1449] sm:$0xff] %v1448
    %1451 = vmatprep.subr.mxu0 %v355
    %1452 = vmatpush1.msra.mxu0 %v354
    %1453 = vmatprep.subr.mxu0 %v359
    %1454 = vmatpush1.msra.mxu0 %v358
    %1455 = vmatprep.subr.mxu0 %v363
    %1456 = vmatpush1.msra.mxu0 %v362
    %1457 = vmatprep.subr.mxu0 %v367
    %1458 = vmatpush1.msra.mxu0 %v366
    %1459 = vmatprep.subr.mxu0 %v371
    %1460 = vmatpush1.msra.mxu0 %v370
    %1461 = vmatprep.subr.mxu0 %v375
    %1462 = vmatpush1.msra.mxu0 %v374
    %1463 = vmatprep.subr.mxu0 %v379
    %1464 = vmatpush1.msra.mxu0 %v378
    %1465 = vmatprep.subr.mxu0 %v383
    %1466 = vmatpush1.msra.mxu0 %v382
    %1467 = vmatprep.subr.mxu0 %v387
    %1468 = vmatpush1.msra.mxu0 %v386
    %1469 = vmatprep.subr.mxu0 %v391
    %1470 = vmatpush1.msra.mxu0 %v390
    %1471 = vmatprep.subr.mxu0 %v395
    %1472 = vmatpush1.msra.mxu0 %v394
    %1473 = vmatprep.subr.mxu0 %v399
    %1474 = vmatpush1.msra.mxu0 %v398
    %1475 = vmatprep.subr.mxu0 %v403
    %1476 = vmatpush1.msra.mxu0 %v402
    %1477 = vmatprep.subr.mxu0 %v407
    %1478 = vmatpush1.msra.mxu0 %v406
    %1479 = vmatprep.subr.mxu0 %v411
    %1480 = vmatpush1.msra.mxu0 %v410
    %1481 = vmatprep.subr.mxu0 %v415
    %1482 = vmatpush1.msra.mxu0 %v414
    %1483 = vmatprep.subr.mxu0 0.0
    %1484 = vmatpush1.msra.mxu0 0.0
    %1485 = vmatprep.subr.mxu0 0.0
    %1486 = vmatpush1.msra.mxu0 0.0
    %1487 = vmatprep.subr.mxu0 0.0
    %1488 = vmatpush1.msra.mxu0 0.0
    %1489 = vmatprep.subr.mxu0 0.0
    %1490 = vmatpush1.msra.mxu0 0.0
    %1491 = vmatprep.subr.mxu0 0.0
    %1492 = vmatpush1.msra.mxu0 0.0
    %1493 = vmatprep.subr.mxu0 0.0
    %1494 = vmatpush1.msra.mxu0 0.0
    %1495 = vmatprep.subr.mxu0 0.0
    %1496 = vmatpush1.msra.mxu0 0.0
    %1497 = vmatprep.subr.mxu0 0.0
    %1498 = vmatpush1.msra.mxu0 0.0
    %1499 = vmatprep.subr.mxu0 0.0
    %1500 = vmatpush1.msra.mxu0 0.0
    %1501 = vmatprep.subr.mxu0 0.0
    %1502 = vmatpush1.msra.mxu0 0.0
    %1503 = vmatprep.subr.mxu0 0.0
    %1504 = vmatpush1.msra.mxu0 0.0
    %1505 = vmatprep.subr.mxu0 0.0
    %1506 = vmatpush1.msra.mxu0 0.0
    %1507 = vmatprep.subr.mxu0 0.0
    %1508 = vmatpush1.msra.mxu0 0.0
    %1509 = vmatprep.subr.mxu0 0.0
    %1510 = vmatpush1.msra.mxu0 0.0
    %1511 = vmatprep.subr.mxu0 0.0
    %1512 = vmatpush1.msra.mxu0 0.0
    %1513 = vmatprep.subr.mxu0 0.0
    %1514 = vmatpush1.msra.mxu0 0.0
    %1515 = vmatprep.mubr.f32.mxu0 0.0
    %1516 = vmatmul.mubr.f32.gmra.mrb[0].mxu0 %v1448
    %v1517 = vpop.f32.mrb[0].mxu0
    %v1518 = vadd.f32 0.0, %v1517
    %v1519 = vpop.f32.mrb[0].mxu0
    %v1520 = vadd.f32 0.0, %v1519
    %1521 = vdwg.mxu0
    %1522 = vmatprep.subr.mxu0 %v357
    %1523 = vmatpush1.msra.mxu0 %v356
    %1524 = vmatprep.subr.mxu0 %v361
    %1525 = vmatpush1.msra.mxu0 %v360
    %1526 = vmatprep.subr.mxu0 %v365
    %1527 = vmatpush1.msra.mxu0 %v364
    %1528 = vmatprep.subr.mxu0 %v369
    %1529 = vmatpush1.msra.mxu0 %v368
    %1530 = vmatprep.subr.mxu0 %v373
    %1531 = vmatpush1.msra.mxu0 %v372
    %1532 = vmatprep.subr.mxu0 %v377
    %1533 = vmatpush1.msra.mxu0 %v376
    %1534 = vmatprep.subr.mxu0 %v381
    %1535 = vmatpush1.msra.mxu0 %v380
    %1536 = vmatprep.subr.mxu0 %v385
    %1537 = vmatpush1.msra.mxu0 %v384
    %1538 = vmatprep.subr.mxu0 %v389
    %1539 = vmatpush1.msra.mxu0 %v388
    %1540 = vmatprep.subr.mxu0 %v393
    %1541 = vmatpush1.msra.mxu0 %v392
    %1542 = vmatprep.subr.mxu0 %v397
    %1543 = vmatpush1.msra.mxu0 %v396
    %1544 = vmatprep.subr.mxu0 %v401
    %1545 = vmatpush1.msra.mxu0 %v400
    %1546 = vmatprep.subr.mxu0 %v405
    %1547 = vmatpush1.msra.mxu0 %v404
    %1548 = vmatprep.subr.mxu0 %v409
    %1549 = vmatpush1.msra.mxu0 %v408
    %1550 = vmatprep.subr.mxu0 %v413
    %1551 = vmatpush1.msra.mxu0 %v412
    %1552 = vmatprep.subr.mxu0 %v417
    %1553 = vmatpush1.msra.mxu0 %v416
    %1554 = vmatprep.subr.mxu0 0.0
    %1555 = vmatpush1.msra.mxu0 0.0
    %1556 = vmatprep.subr.mxu0 0.0
    %1557 = vmatpush1.msra.mxu0 0.0
    %1558 = vmatprep.subr.mxu0 0.0
    %1559 = vmatpush1.msra.mxu0 0.0
    %1560 = vmatprep.subr.mxu0 0.0
    %1561 = vmatpush1.msra.mxu0 0.0
    %1562 = vmatprep.subr.mxu0 0.0
    %1563 = vmatpush1.msra.mxu0 0.0
    %1564 = vmatprep.subr.mxu0 0.0
    %1565 = vmatpush1.msra.mxu0 0.0
    %1566 = vmatprep.subr.mxu0 0.0
    %1567 = vmatpush1.msra.mxu0 0.0
    %1568 = vmatprep.subr.mxu0 0.0
    %1569 = vmatpush1.msra.mxu0 0.0
    %1570 = vmatprep.subr.mxu0 0.0
    %1571 = vmatpush1.msra.mxu0 0.0
    %1572 = vmatprep.subr.mxu0 0.0
    %1573 = vmatpush1.msra.mxu0 0.0
    %1574 = vmatprep.subr.mxu0 0.0
    %1575 = vmatpush1.msra.mxu0 0.0
    %1576 = vmatprep.subr.mxu0 0.0
    %1577 = vmatpush1.msra.mxu0 0.0
    %1578 = vmatprep.subr.mxu0 0.0
    %1579 = vmatpush1.msra.mxu0 0.0
    %1580 = vmatprep.subr.mxu0 0.0
    %1581 = vmatpush1.msra.mxu0 0.0
    %1582 = vmatprep.subr.mxu0 0.0
    %1583 = vmatpush1.msra.mxu0 0.0
    %1584 = vmatprep.subr.mxu0 0.0
    %1585 = vmatpush1.msra.mxu0 0.0
    %1586 = vmatprep.mubr.f32.mxu0 0.0
    %1587 = vmatmul.mubr.f32.gmra.mrb[0].mxu0 %v1448
    %v1588 = vpop.f32.mrb[0].mxu0
    %v1589 = vadd.f32 0.0, %v1588
    %v1590 = vpop.f32.mrb[0].mxu0
    %v1591 = vadd.f32 0.0, %v1590
    %1592 = vdwg.mxu0
    %v1593 = vadd.f32 %v231, %v1518
    %v1594 = vadd.f32 %v233, %v1520
    %v1595 = vadd.f32 %v344, %v1589
    %v1596 = vadd.f32 %v346, %v1591
    %v1597 = vxor.u32 %v1593, 2147483648
    %v1598 = vmul.f32 %v1597, 1.442695
    %v1599 = vpow.pop %v1598
    %v1600 = vadd.f32 %v1599, 1.0
    %v1601 = vrcp.pop %v1600
    %v1602 = vmul.f32 1.0, %v1601
    %v1603 = vxor.u32 %v1594, 2147483648
    %v1604 = vmul.f32 %v1603, 1.442695
    %v1605 = vpow.pop %v1604
    %v1606 = vadd.f32 %v1605, 1.0
    %v1607 = vrcp.pop %v1606
    %v1608 = vmul.f32 1.0, %v1607
    %v1609 = vtanh.pop %v1595
    %v1610 = vxor.u32 %v1596, 2147483648
    %v1611 = vmul.f32 %v1610, 1.442695
    %v1612 = vpow.pop %v1611
    %v1613 = vadd.f32 %v1612, 1.0
    %v1614 = vrcp.pop %v1613
    %v1615 = vmul.f32 1.0, %v1614
    %v1616 = vmul.f32 %v1608, %v1446
    %v1617 = vmul.f32 %v1602, %v1609
    %v1618 = vadd.f32 %v1616, %v1617
    %v1619 = vtanh.pop %v1618
    %v1620 = vmul.f32 %v1615, %v1619
    %s1621 = scalar_lea.vmem [#allocation10], 48
    %1622 = vst [vmem:[%s1621] sm:$0xff] %v1620
    %1623 = vmatprep.subr.mxu0 %v355
    %1624 = vmatpush1.msra.mxu0 %v354
    %1625 = vmatprep.subr.mxu0 %v359
    %1626 = vmatpush1.msra.mxu0 %v358
    %1627 = vmatprep.subr.mxu0 %v363
    %1628 = vmatpush1.msra.mxu0 %v362
    %1629 = vmatprep.subr.mxu0 %v367
    %1630 = vmatpush1.msra.mxu0 %v366
    %1631 = vmatprep.subr.mxu0 %v371
    %1632 = vmatpush1.msra.mxu0 %v370
    %1633 = vmatprep.subr.mxu0 %v375
    %1634 = vmatpush1.msra.mxu0 %v374
    %1635 = vmatprep.subr.mxu0 %v379
    %1636 = vmatpush1.msra.mxu0 %v378
    %1637 = vmatprep.subr.mxu0 %v383
    %1638 = vmatpush1.msra.mxu0 %v382
    %1639 = vmatprep.subr.mxu0 %v387
    %1640 = vmatpush1.msra.mxu0 %v386
    %1641 = vmatprep.subr.mxu0 %v391
    %1642 = vmatpush1.msra.mxu0 %v390
    %1643 = vmatprep.subr.mxu0 %v395
    %1644 = vmatpush1.msra.mxu0 %v394
    %1645 = vmatprep.subr.mxu0 %v399
    %1646 = vmatpush1.msra.mxu0 %v398
    %1647 = vmatprep.subr.mxu0 %v403
    %1648 = vmatpush1.msra.mxu0 %v402
    %1649 = vmatprep.subr.mxu0 %v407
    %1650 = vmatpush1.msra.mxu0 %v406
    %1651 = vmatprep.subr.mxu0 %v411
    %1652 = vmatpush1.msra.mxu0 %v410
    %1653 = vmatprep.subr.mxu0 %v415
    %1654 = vmatpush1.msra.mxu0 %v414
    %1655 = vmatprep.subr.mxu0 0.0
    %1656 = vmatpush1.msra.mxu0 0.0
    %1657 = vmatprep.subr.mxu0 0.0
    %1658 = vmatpush1.msra.mxu0 0.0
    %1659 = vmatprep.subr.mxu0 0.0
    %1660 = vmatpush1.msra.mxu0 0.0
    %1661 = vmatprep.subr.mxu0 0.0
    %1662 = vmatpush1.msra.mxu0 0.0
    %1663 = vmatprep.subr.mxu0 0.0
    %1664 = vmatpush1.msra.mxu0 0.0
    %1665 = vmatprep.subr.mxu0 0.0
    %1666 = vmatpush1.msra.mxu0 0.0
    %1667 = vmatprep.subr.mxu0 0.0
    %1668 = vmatpush1.msra.mxu0 0.0
    %1669 = vmatprep.subr.mxu0 0.0
    %1670 = vmatpush1.msra.mxu0 0.0
    %1671 = vmatprep.subr.mxu0 0.0
    %1672 = vmatpush1.msra.mxu0 0.0
    %1673 = vmatprep.subr.mxu0 0.0
    %1674 = vmatpush1.msra.mxu0 0.0
    %1675 = vmatprep.subr.mxu0 0.0
    %1676 = vmatpush1.msra.mxu0 0.0
    %1677 = vmatprep.subr.mxu0 0.0
    %1678 = vmatpush1.msra.mxu0 0.0
    %1679 = vmatprep.subr.mxu0 0.0
    %1680 = vmatpush1.msra.mxu0 0.0
    %1681 = vmatprep.subr.mxu0 0.0
    %1682 = vmatpush1.msra.mxu0 0.0
    %1683 = vmatprep.subr.mxu0 0.0
    %1684 = vmatpush1.msra.mxu0 0.0
    %1685 = vmatprep.subr.mxu0 0.0
    %1686 = vmatpush1.msra.mxu0 0.0
    %1687 = vmatprep.mubr.f32.mxu0 0.0
    %1688 = vmatmul.mubr.f32.gmra.mrb[0].mxu0 %v1620
    %v1689 = vpop.f32.mrb[0].mxu0
    %v1690 = vadd.f32 0.0, %v1689
    %v1691 = vpop.f32.mrb[0].mxu0
    %v1692 = vadd.f32 0.0, %v1691
    %1693 = vdwg.mxu0
    %1694 = vmatprep.subr.mxu0 %v357
    %1695 = vmatpush1.msra.mxu0 %v356
    %1696 = vmatprep.subr.mxu0 %v361
    %1697 = vmatpush1.msra.mxu0 %v360
    %1698 = vmatprep.subr.mxu0 %v365
    %1699 = vmatpush1.msra.mxu0 %v364
    %1700 = vmatprep.subr.mxu0 %v369
    %1701 = vmatpush1.msra.mxu0 %v368
    %1702 = vmatprep.subr.mxu0 %v373
    %1703 = vmatpush1.msra.mxu0 %v372
    %1704 = vmatprep.subr.mxu0 %v377
    %1705 = vmatpush1.msra.mxu0 %v376
    %1706 = vmatprep.subr.mxu0 %v381
    %1707 = vmatpush1.msra.mxu0 %v380
    %1708 = vmatprep.subr.mxu0 %v385
    %1709 = vmatpush1.msra.mxu0 %v384
    %1710 = vmatprep.subr.mxu0 %v389
    %1711 = vmatpush1.msra.mxu0 %v388
    %1712 = vmatprep.subr.mxu0 %v393
    %1713 = vmatpush1.msra.mxu0 %v392
    %1714 = vmatprep.subr.mxu0 %v397
    %1715 = vmatpush1.msra.mxu0 %v396
    %1716 = vmatprep.subr.mxu0 %v401
    %1717 = vmatpush1.msra.mxu0 %v400
    %1718 = vmatprep.subr.mxu0 %v405
    %1719 = vmatpush1.msra.mxu0 %v404
    %1720 = vmatprep.subr.mxu0 %v409
    %1721 = vmatpush1.msra.mxu0 %v408
    %1722 = vmatprep.subr.mxu0 %v413
    %1723 = vmatpush1.msra.mxu0 %v412
    %1724 = vmatprep.subr.mxu0 %v417
    %1725 = vmatpush1.msra.mxu0 %v416
    %1726 = vmatprep.subr.mxu0 0.0
    %1727 = vmatpush1.msra.mxu0 0.0
    %1728 = vmatprep.subr.mxu0 0.0
    %1729 = vmatpush1.msra.mxu0 0.0
    %1730 = vmatprep.subr.mxu0 0.0
    %1731 = vmatpush1.msra.mxu0 0.0
    %1732 = vmatprep.subr.mxu0 0.0
    %1733 = vmatpush1.msra.mxu0 0.0
    %1734 = vmatprep.subr.mxu0 0.0
    %1735 = vmatpush1.msra.mxu0 0.0
    %1736 = vmatprep.subr.mxu0 0.0
    %1737 = vmatpush1.msra.mxu0 0.0
    %1738 = vmatprep.subr.mxu0 0.0
    %1739 = vmatpush1.msra.mxu0 0.0
    %1740 = vmatprep.subr.mxu0 0.0
    %1741 = vmatpush1.msra.mxu0 0.0
    %1742 = vmatprep.subr.mxu0 0.0
    %1743 = vmatpush1.msra.mxu0 0.0
    %1744 = vmatprep.subr.mxu0 0.0
    %1745 = vmatpush1.msra.mxu0 0.0
    %1746 = vmatprep.subr.mxu0 0.0
    %1747 = vmatpush1.msra.mxu0 0.0
    %1748 = vmatprep.subr.mxu0 0.0
    %1749 = vmatpush1.msra.mxu0 0.0
    %1750 = vmatprep.subr.mxu0 0.0
    %1751 = vmatpush1.msra.mxu0 0.0
    %1752 = vmatprep.subr.mxu0 0.0
    %1753 = vmatpush1.msra.mxu0 0.0
    %1754 = vmatprep.subr.mxu0 0.0
    %1755 = vmatpush1.msra.mxu0 0.0
    %1756 = vmatprep.subr.mxu0 0.0
    %1757 = vmatpush1.msra.mxu0 0.0
    %1758 = vmatprep.mubr.f32.mxu0 0.0
    %1759 = vmatmul.mubr.f32.gmra.mrb[0].mxu0 %v1620
    %v1760 = vpop.f32.mrb[0].mxu0
    %v1761 = vadd.f32 0.0, %v1760
    %v1762 = vpop.f32.mrb[0].mxu0
    %v1763 = vadd.f32 0.0, %v1762
    %1764 = vdwg.mxu0
    %v1765 = vadd.f32 %v237, %v1690
    %v1766 = vadd.f32 %v239, %v1692
    %v1767 = vadd.f32 %v350, %v1761
    %v1768 = vadd.f32 %v352, %v1763
    %v1769 = vxor.u32 %v1765, 2147483648
    %v1770 = vmul.f32 %v1769, 1.442695
    %v1771 = vpow.pop %v1770
    %v1772 = vadd.f32 %v1771, 1.0
    %v1773 = vrcp.pop %v1772
    %v1774 = vmul.f32 1.0, %v1773
    %v1775 = vxor.u32 %v1766, 2147483648
    %v1776 = vmul.f32 %v1775, 1.442695
    %v1777 = vpow.pop %v1776
    %v1778 = vadd.f32 %v1777, 1.0
    %v1779 = vrcp.pop %v1778
    %v1780 = vmul.f32 1.0, %v1779
    %v1781 = vtanh.pop %v1767
    %v1782 = vxor.u32 %v1768, 2147483648
    %v1783 = vmul.f32 %v1782, 1.442695
    %v1784 = vpow.pop %v1783
    %v1785 = vadd.f32 %v1784, 1.0
    %v1786 = vrcp.pop %v1785
    %v1787 = vmul.f32 1.0, %v1786
    %v1788 = vmul.f32 %v1780, %v1618
    %v1789 = vmul.f32 %v1774, %v1781
    %v1790 = vadd.f32 %v1788, %v1789
    %v1791 = vtanh.pop %v1790
    %v1792 = vmul.f32 %v1787, %v1791
    %s1793 = scalar_lea.vmem [#allocation10], 56
    %1794 = vst [vmem:[%s1793] sm:$0xff] %v1792
    %1795 = vst [vmem:[#allocation2] sm:$0xff] %v1792
    %1796 = vst [vmem:[#allocation3] sm:$0xff] %v1790
    // Predicated region
    $region34: #{tpu_custom_call.1} parent=1 // pred_check
      _
    $region35: #{tpu_custom_call.1} parent=1 // pred_check_branch
      %1798 = sbr.rel (0) target = $region37
    $region36: #{tpu_custom_call.1} parent=1 // pred_region
      %s1800 = ssub.s32 1024, 1024
      %1801 = vsyncadd [#allocation6], %s1800
      %s1802 = sshll.u32 [#allocation10], 4
      %s1803 = int_to_ptr.vmem [resolvable:$true] %s1802
      %1808 = dma.vmem_to_hbm [thread:$0]  %s1803, 1024, %s4, [#allocation6], 128, 128, 8
    $region37: #{tpu_custom_call.1} parent=1 // pred_fallthru
      _
    // Predicated region
    $region38: #{tpu_custom_call.1} parent=1 // pred_check
      _
    $region39: #{tpu_custom_call.1} parent=1 // pred_check_branch
      %1810 = sbr.rel (0) target = $region41
    $region40: #{tpu_custom_call.1} parent=1 // pred_region
      %1811 = dma.done [#allocation6], 1024
    $region41: #{tpu_custom_call.1} parent=1 // pred_fallthru
      _
    %1812 = vsyncpa [#allocation5], 1
    %1813 = vsyncpa [#allocation8], 1
    %1814 = vsyncpa [#allocation6], 1

</llo_original>
